<compile_context>
chip_gen: v5e
topology: v5e:2x2
jax: 0.10.0
libtpu: 0.0.40
codegen_flags: <defaults>
</compile_context>

<pallas_src>
import math
import functools

import jax
import jax.numpy as jnp
from jax.experimental import pallas as pl
from jax.experimental.pallas import tpu as pltpu


MATMUL_DTYPE = jnp.bfloat16   # MXU input dtype; accumulation is always f32.


# ---------------------------------------------------------------------------
# Fused forward kernel (single pallas_call, everything resident in VMEM)
# ---------------------------------------------------------------------------

def fused_forward_kernel(
    # inputs
    patches_ref, proj_w_ref, bias_pe_ref, head_ind_ref, head_ind_t_ref,
    pool_ref,
    wqkv_ref, bqkv_ref, wo_ref, bo_ref, ln1_g_ref, ln1_b_ref,
    w1_ref, b1_ref, w2_ref, b2_ref, ln2_g_ref, ln2_b_ref,
    fc_w_ref, fc_b_ref,
    # output
    o_ref,
    *, B, N, D, h, L, eps=1e-5,
):
    def mm(a, w):
        # bf16 (or f32) MXU inputs, f32 accumulation.  Each activation is cast
        # exactly once (QKV fusion means x feeds a single matmul per layer).
        return jnp.dot(a.astype(w.dtype), w, preferred_element_type=jnp.float32)

    def layer_norm(v, g, b):
        # PyTorch semantics: biased variance, eps=1e-5, f32 math.
        mu = jnp.mean(v, axis=-1, keepdims=True)
        var = jnp.mean(jnp.square(v - mu), axis=-1, keepdims=True)
        return (v - mu) * jax.lax.rsqrt(var + eps) * g + b

    head_ind = head_ind_ref[...]       # (D, h)  f32: head_ind[d, i] = [d in head i]
    head_ind_t = head_ind_t_ref[...]   # (h, D)  f32

    # ---- patch projection (stride-P conv == matmul) + folded (proj_b + PE) ----
    x = mm(patches_ref[...], proj_w_ref[...]) + bias_pe_ref[...]   # (B*N, D) f32

    # ---- transformer encoder layers (post-norm, relu, eval-mode dropout) ----
    for l in range(L):
        # Fused QKV projection; the 1/sqrt(hd) scale is pre-folded into the
        # Q columns of wqkv / bqkv by the wrapper.
        qkv = mm(x, wqkv_ref[l]) + bqkv_ref[l]                     # (B*N, 3D) f32
        q = qkv[:, :D]
        k = qkv[:, D:2 * D]
        v = qkv[:, 2 * D:]

        # Attention over the *image* axis (PyTorch batch_first=False given a
        # (B, N, D) input => seq len == B, batch == N patches x h heads).
        # Key/value images are aligned to query rows with sublane rolls of
        # size s*N; per-head score sums / weight broadcasts go through tiny
        # indicator matmuls on the MXU (which has huge slack here).
        k_s = [k] + [pltpu.roll(k, shift=(B - s) * N, axis=0) for s in range(1, B)]
        v_s = [v] + [pltpu.roll(v, shift=(B - s) * N, axis=0) for s in range(1, B)]

        scores = [jnp.dot(q * ks, head_ind, preferred_element_type=jnp.float32)
                  for ks in k_s]                                   # B x (B*N, h)
        m = scores[0]
        for s_ in scores[1:]:
            m = jnp.maximum(m, s_)
        exps = [jnp.exp(s_ - m) for s_ in scores]
        denom = exps[0]
        for e_ in exps[1:]:
            denom = denom + e_
        inv = pl.reciprocal(denom, approx=True)                    # EUP slot

        ctx = None
        for e_, vs in zip(exps, v_s):
            w_full = jnp.dot(e_ * inv, head_ind_t,
                             preferred_element_type=jnp.float32)   # (B*N, D)
            contrib = w_full * vs
            ctx = contrib if ctx is None else ctx + contrib

        attn = mm(ctx, wo_ref[l]) + bo_ref[l]                      # (B*N, D)
        x = layer_norm(x + attn, ln1_g_ref[l], ln1_b_ref[l])

        ffn = jnp.maximum(mm(x, w1_ref[l]) + b1_ref[l], 0.0)       # (B*N, dff)
        ffn = mm(ffn, w2_ref[l]) + b2_ref[l]                       # (B*N, D)
        x = layer_norm(x + ffn, ln2_g_ref[l], ln2_b_ref[l])

    # ---- mean over patches (single pooling matmul) -> fc_out -> sigmoid ----
    pooled = jnp.dot(pool_ref[...], x, preferred_element_type=jnp.float32)  # (B, D)
    logits = mm(pooled, fc_w_ref[...]) + fc_b_ref[...]             # (B, out_dim)
    o_ref[...] = jax.nn.sigmoid(logits).astype(o_ref.dtype)


# ---------------------------------------------------------------------------
# Parameters (deterministic synthetic init — shapes match the module __init__)
# ---------------------------------------------------------------------------

def sinusoidal_positional_encoding(d_model, num_patches):
    position = jnp.arange(num_patches, dtype=jnp.float32)[:, None]
    div_term = jnp.exp(
        jnp.arange(0, d_model, 2, dtype=jnp.float32)
        * (-(math.log(10000.0) / d_model))
    )
    pe = jnp.zeros((num_patches, d_model), jnp.float32)
    pe = pe.at[:, 0::2].set(jnp.sin(position * div_term))
    pe = pe.at[:, 1::2].set(jnp.cos(position * div_term))
    return pe                       # (num_patches, d_model)


def init_params(key, cfg):
    C, P, D = cfg["in_chans"], cfg["patch_size"], cfg["embed_dim"]
    dff, out_dim, L = cfg["dim_ff"], cfg["output_dim"], cfg["num_layers"]
    N = (cfg["image_size"] // P) ** 2

    def nrm(k, shape, scale=0.02):
        return scale * jax.random.normal(k, shape, jnp.float32)

    keys = jax.random.split(key, 2 + 4 * L)
    params = {}
    conv_w = nrm(keys[0], (D, C, P, P))                 # PyTorch Conv2d layout
    params["proj_w"] = conv_w.reshape(D, C * P * P).T   # (C*P*P, D)
    params["proj_b"] = jnp.zeros((1, D), jnp.float32)
    params["pe"] = sinusoidal_positional_encoding(D, N)

    layers = []
    for l in range(L):
        k0, k1, k2, k3 = keys[2 + 4 * l: 2 + 4 * (l + 1)]
        layers.append(dict(
            # Fused in-projection, kept un-split: columns are [q | k | v].
            wqkv=nrm(k0, (3 * D, D)).T,                 # (D, 3D)
            bqkv=jnp.zeros((1, 3 * D), jnp.float32),
            wo=nrm(k1, (D, D)).T, bo=jnp.zeros((1, D), jnp.float32),
            ln1_g=jnp.ones((1, D), jnp.float32), ln1_b=jnp.zeros((1, D), jnp.float32),
            w1=nrm(k2, (dff, D)).T, b1=jnp.zeros((1, dff), jnp.float32),
            w2=nrm(k3, (D, dff)).T, b2=jnp.zeros((1, D), jnp.float32),
            ln2_g=jnp.ones((1, D), jnp.float32), ln2_b=jnp.zeros((1, D), jnp.float32),
        ))
    params["layers"] = layers

    params["fc_w"] = nrm(keys[1], (out_dim, D)).T       # (D, out_dim)
    params["fc_b"] = jnp.zeros((1, out_dim), jnp.float32)
    return params


# ---------------------------------------------------------------------------
# Forward pass wrapper: one fused pallas_call
# ---------------------------------------------------------------------------

def custom_image_embedding_forward(x, params, cfg):
    B, C, H, W = x.shape
    P, D = cfg["patch_size"], cfg["embed_dim"]
    h, L = cfg["num_heads"], cfg["num_layers"]
    out_dim = cfg["output_dim"]
    hd = D // h
    Hp, Wp = H // P, W // P
    N = Hp * Wp

    # Patch extraction is pure layout glue (the projection matmul is in-kernel).
    patches = (
        x.reshape(B, C, Hp, P, Wp, P)
         .transpose(0, 2, 4, 1, 3, 5)
         .reshape(B * N, C * P * P)
    )

    # Fold proj bias + tiled PE into one (B*N, D) additive constant (trace time).
    bias_pe = jnp.tile(params["pe"], (B, 1)) + params["proj_b"]

    # Head-indicator matrices: head_ind[d, i] = 1 if feature d belongs to head i.
    head_ids = jnp.arange(D, dtype=jnp.int32) // hd
    head_ind = (head_ids[:, None] == jnp.arange(h)[None, :]).astype(jnp.float32)
    head_ind_t = head_ind.T                                         # (h, D)

    # Mean-pool matrix: pooled = pool @ x, pool[b, b*N + n] = 1/N.
    pool = jnp.repeat(jnp.eye(B, dtype=jnp.float32), N, axis=1) / N  # (B, B*N)

    mdt = MATMUL_DTYPE
    scale = 1.0 / math.sqrt(hd)

    lp = params["layers"]

    def stack(name, cast=False):
        arr = jnp.stack([lyr[name] for lyr in lp], axis=0)
        return arr.astype(mdt) if cast else arr

    # Fold the attention scale into the Q columns of the fused QKV weight/bias.
    col_scale = jnp.concatenate(
        [jnp.full((D,), scale, jnp.float32), jnp.ones((2 * D,), jnp.float32)])
    wqkv = (jnp.stack([lyr["wqkv"] for lyr in lp], axis=0) * col_scale).astype(mdt)
    bqkv = jnp.stack([lyr["bqkv"] for lyr in lp], axis=0) * col_scale

    inputs = [
        patches, params["proj_w"].astype(mdt), bias_pe, head_ind, head_ind_t,
        pool,
        wqkv, bqkv,
        stack("wo", True), stack("bo"), stack("ln1_g"), stack("ln1_b"),
        stack("w1", True), stack("b1"), stack("w2", True), stack("b2"),
        stack("ln2_g"), stack("ln2_b"),
        params["fc_w"].astype(mdt), params["fc_b"],
    ]

    kernel = functools.partial(fused_forward_kernel, B=B, N=N, D=D, h=h, L=L)

    in_specs = [
        pl.BlockSpec(a.shape, (lambda i, n=a.ndim: (0,) * n)) for a in inputs
    ]
    out_specs = pl.BlockSpec((B, out_dim), lambda i: (0, 0))

    return pl.pallas_call(
        kernel,
        out_shape=jax.ShapeDtypeStruct((B, out_dim), jnp.float32),
        grid=(1,),
        in_specs=in_specs,
        out_specs=out_specs,
        compiler_params=pltpu.CompilerParams(
            dimension_semantics=("arbitrary",),
            # Tiny here; realistic configs: <= ~48 MiB on v7x, ~100 MiB v5e/v6e.
            vmem_limit_bytes=32 * 1024 * 1024,
        ),
    )(*inputs)


# ---------------------------------------------------------------------------

if __name__ == "__main__":
    # Small synthetic config consistent with the module's constructor.
    cfg = dict(
        image_size=16,
        patch_size=8,
        in_chans=3,
        embed_dim=32,
        num_heads=4,
        num_layers=2,
        output_dim=32,
        dim_ff=128,   # PyTorch default is 2048; scaled with the small embed_dim
    )

    key = jax.random.PRNGKey(0)
    k_x, k_p = jax.random.split(key)
    x = jax.random.normal(
        k_x, (2, cfg["in_chans"], cfg["image_size"], cfg["image_size"]),
        jnp.float32,
    )
    params = init_params(k_p, cfg)

    fwd = jax.jit(functools.partial(custom_image_embedding_forward, cfg=cfg))
    out = jax.block_until_ready(fwd(x, params))

    assert out.shape == (2, cfg["output_dim"]), out.shape
    assert bool(jnp.all(jnp.isfinite(out)))
    assert bool(jnp.all((out >= 0.0) & (out <= 1.0)))  # sigmoid range
    print("KERNEL_OK")
</pallas_src>

<mosaic_0001>
module attributes {stable_mosaic.version = 11 : i64} {
  func.func @fused_forward_kernel(%arg0: i32, %arg1: memref<8x192xf32, #tpu.memory_space<vmem>>, %arg2: memref<192x32xbf16, #tpu.memory_space<vmem>>, %arg3: memref<8x32xf32, #tpu.memory_space<vmem>>, %arg4: memref<32x4xf32, #tpu.memory_space<vmem>>, %arg5: memref<4x32xf32, #tpu.memory_space<vmem>>, %arg6: memref<2x8xf32, #tpu.memory_space<vmem>>, %arg7: memref<2x32x96xbf16, #tpu.memory_space<vmem>>, %arg8: memref<2x1x96xf32, #tpu.memory_space<vmem>>, %arg9: memref<2x32x32xbf16, #tpu.memory_space<vmem>>, %arg10: memref<2x1x32xf32, #tpu.memory_space<vmem>>, %arg11: memref<2x1x32xf32, #tpu.memory_space<vmem>>, %arg12: memref<2x1x32xf32, #tpu.memory_space<vmem>>, %arg13: memref<2x32x128xbf16, #tpu.memory_space<vmem>>, %arg14: memref<2x1x128xf32, #tpu.memory_space<vmem>>, %arg15: memref<2x128x32xbf16, #tpu.memory_space<vmem>>, %arg16: memref<2x1x32xf32, #tpu.memory_space<vmem>>, %arg17: memref<2x1x32xf32, #tpu.memory_space<vmem>>, %arg18: memref<2x1x32xf32, #tpu.memory_space<vmem>>, %arg19: memref<32x32xbf16, #tpu.memory_space<vmem>>, %arg20: memref<1x32xf32, #tpu.memory_space<vmem>>, %arg21: memref<2x32xf32, #tpu.memory_space<vmem>>) attributes {dimension_semantics = [#tpu.dimension_semantics<arbitrary>], iteration_bounds = array<i64: 1>, scalar_prefetch = 0 : i64, scratch_operands = 0 : i64, tpu.core_type = #tpu.core_type<tc>, window_params = [{pipeline_mode = #tpu.pipeline_mode<synchronous>, transform_indices = @transform_0, window_bounds = array<i64: 8, 192>}, {pipeline_mode = #tpu.pipeline_mode<synchronous>, transform_indices = @transform_1, window_bounds = array<i64: 192, 32>}, {pipeline_mode = #tpu.pipeline_mode<synchronous>, transform_indices = @transform_2, window_bounds = array<i64: 8, 32>}, {pipeline_mode = #tpu.pipeline_mode<synchronous>, transform_indices = @transform_3, window_bounds = array<i64: 32, 4>}, {pipeline_mode = #tpu.pipeline_mode<synchronous>, transform_indices = @transform_4, window_bounds = array<i64: 4, 32>}, {pipeline_mode = #tpu.pipeline_mode<synchronous>, transform_indices = @transform_5, window_bounds = array<i64: 2, 8>}, {pipeline_mode = #tpu.pipeline_mode<synchronous>, transform_indices = @transform_6, window_bounds = array<i64: 2, 32, 96>}, {pipeline_mode = #tpu.pipeline_mode<synchronous>, transform_indices = @transform_7, window_bounds = array<i64: 2, 1, 96>}, {pipeline_mode = #tpu.pipeline_mode<synchronous>, transform_indices = @transform_8, window_bounds = array<i64: 2, 32, 32>}, {pipeline_mode = #tpu.pipeline_mode<synchronous>, transform_indices = @transform_9, window_bounds = array<i64: 2, 1, 32>}, {pipeline_mode = #tpu.pipeline_mode<synchronous>, transform_indices = @transform_10, window_bounds = array<i64: 2, 1, 32>}, {pipeline_mode = #tpu.pipeline_mode<synchronous>, transform_indices = @transform_11, window_bounds = array<i64: 2, 1, 32>}, {pipeline_mode = #tpu.pipeline_mode<synchronous>, transform_indices = @transform_12, window_bounds = array<i64: 2, 32, 128>}, {pipeline_mode = #tpu.pipeline_mode<synchronous>, transform_indices = @transform_13, window_bounds = array<i64: 2, 1, 128>}, {pipeline_mode = #tpu.pipeline_mode<synchronous>, transform_indices = @transform_14, window_bounds = array<i64: 2, 128, 32>}, {pipeline_mode = #tpu.pipeline_mode<synchronous>, transform_indices = @transform_15, window_bounds = array<i64: 2, 1, 32>}, {pipeline_mode = #tpu.pipeline_mode<synchronous>, transform_indices = @transform_16, window_bounds = array<i64: 2, 1, 32>}, {pipeline_mode = #tpu.pipeline_mode<synchronous>, transform_indices = @transform_17, window_bounds = array<i64: 2, 1, 32>}, {pipeline_mode = #tpu.pipeline_mode<synchronous>, transform_indices = @transform_18, window_bounds = array<i64: 32, 32>}, {pipeline_mode = #tpu.pipeline_mode<synchronous>, transform_indices = @transform_19, window_bounds = array<i64: 1, 32>}, {pipeline_mode = #tpu.pipeline_mode<synchronous>, transform_indices = @transform_20, window_bounds = array<i64: 2, 32>}]} {
    %c0 = arith.constant 0 : index
    %c0_0 = arith.constant 0 : index
    %0 = vector.load %arg4[%c0, %c0_0] : memref<32x4xf32, #tpu.memory_space<vmem>>, vector<32x4xf32>
    %c0_1 = arith.constant 0 : index
    %c0_2 = arith.constant 0 : index
    %1 = vector.load %arg5[%c0_1, %c0_2] : memref<4x32xf32, #tpu.memory_space<vmem>>, vector<4x32xf32>
    %c0_3 = arith.constant 0 : index
    %c0_4 = arith.constant 0 : index
    %2 = vector.load %arg1[%c0_3, %c0_4] : memref<8x192xf32, #tpu.memory_space<vmem>>, vector<8x192xf32>
    %c0_5 = arith.constant 0 : index
    %c0_6 = arith.constant 0 : index
    %3 = vector.load %arg2[%c0_5, %c0_6] : memref<192x32xbf16, #tpu.memory_space<vmem>>, vector<192x32xbf16>
    %4 = arith.truncf %2 : vector<8x192xf32> to vector<8x192xbf16>
    %cst = arith.constant dense<0.000000e+00> : vector<8x32xf32>
    %5 = tpu.matmul %4, %3, %cst {dimension_numbers = #tpu.dot_dimension_numbers<[1], [0], [0], [1], [0, 0, 1, 1], [], []>} : vector<8x192xbf16>, vector<192x32xbf16>, vector<8x32xf32> -> vector<8x32xf32>
    %c0_7 = arith.constant 0 : index
    %c0_8 = arith.constant 0 : index
    %6 = vector.load %arg3[%c0_7, %c0_8] : memref<8x32xf32, #tpu.memory_space<vmem>>, vector<8x32xf32>
    %7 = arith.addf %5, %6 : vector<8x32xf32>
    %c0_9 = arith.constant 0 : index
    %c0_10 = arith.constant 0 : index
    %c0_11 = arith.constant 0 : index
    %8 = vector.load %arg7[%c0_9, %c0_10, %c0_11] : memref<2x32x96xbf16, #tpu.memory_space<vmem>>, vector<1x32x96xbf16>
    %9 = vector.shape_cast %8 : vector<1x32x96xbf16> to vector<32x96xbf16>
    %10 = arith.truncf %7 : vector<8x32xf32> to vector<8x32xbf16>
    %cst_12 = arith.constant dense<0.000000e+00> : vector<8x96xf32>
    %11 = tpu.matmul %10, %9, %cst_12 {dimension_numbers = #tpu.dot_dimension_numbers<[1], [0], [0], [1], [0, 0, 1, 1], [], []>} : vector<8x32xbf16>, vector<32x96xbf16>, vector<8x96xf32> -> vector<8x96xf32>
    %c0_13 = arith.constant 0 : index
    %c0_14 = arith.constant 0 : index
    %c0_15 = arith.constant 0 : index
    %12 = vector.load %arg8[%c0_13, %c0_14, %c0_15] : memref<2x1x96xf32, #tpu.memory_space<vmem>>, vector<1x1x96xf32>
    %13 = vector.shape_cast %12 : vector<1x1x96xf32> to vector<1x96xf32>
    %14 = vector.broadcast %13 : vector<1x96xf32> to vector<8x96xf32>
    %15 = arith.addf %11, %14 : vector<8x96xf32>
    %16 = vector.extract_strided_slice %15 {offsets = [0, 0], sizes = [8, 32], strides = [1, 1]} : vector<8x96xf32> to vector<8x32xf32>
    %17 = vector.extract_strided_slice %15 {offsets = [0, 32], sizes = [8, 32], strides = [1, 1]} : vector<8x96xf32> to vector<8x32xf32>
    %18 = vector.extract_strided_slice %15 {offsets = [0, 64], sizes = [8, 32], strides = [1, 1]} : vector<8x96xf32> to vector<8x32xf32>
    %c4_i32 = arith.constant 4 : i32
    %19 = tpu.dynamic_rotate %17 by %c4_i32 dim 0 : vector<8x32xf32>, i32 -> vector<8x32xf32>
    %c4_i32_16 = arith.constant 4 : i32
    %20 = tpu.dynamic_rotate %18 by %c4_i32_16 dim 0 : vector<8x32xf32>, i32 -> vector<8x32xf32>
    %21 = arith.mulf %16, %17 : vector<8x32xf32>
    %cst_17 = arith.constant dense<0.000000e+00> : vector<8x4xf32>
    %22 = tpu.matmul %21, %0, %cst_17 {dimension_numbers = #tpu.dot_dimension_numbers<[1], [0], [0], [1], [0, 0, 1, 1], [], []>} : vector<8x32xf32>, vector<32x4xf32>, vector<8x4xf32> -> vector<8x4xf32>
    %23 = arith.mulf %16, %19 : vector<8x32xf32>
    %cst_18 = arith.constant dense<0.000000e+00> : vector<8x4xf32>
    %24 = tpu.matmul %23, %0, %cst_18 {dimension_numbers = #tpu.dot_dimension_numbers<[1], [0], [0], [1], [0, 0, 1, 1], [], []>} : vector<8x32xf32>, vector<32x4xf32>, vector<8x4xf32> -> vector<8x4xf32>
    %25 = arith.maximumf %22, %24 : vector<8x4xf32>
    %26 = arith.subf %22, %25 : vector<8x4xf32>
    %27 = math.exp %26 : vector<8x4xf32>
    %28 = arith.subf %24, %25 : vector<8x4xf32>
    %29 = math.exp %28 : vector<8x4xf32>
    %30 = arith.addf %27, %29 : vector<8x4xf32>
    %31 = tpu.reciprocal %30 {approx = true} : vector<8x4xf32> -> vector<8x4xf32>
    %32 = arith.mulf %27, %31 : vector<8x4xf32>
    %cst_19 = arith.constant dense<0.000000e+00> : vector<8x32xf32>
    %33 = tpu.matmul %32, %1, %cst_19 {dimension_numbers = #tpu.dot_dimension_numbers<[1], [0], [0], [1], [0, 0, 1, 1], [], []>} : vector<8x4xf32>, vector<4x32xf32>, vector<8x32xf32> -> vector<8x32xf32>
    %34 = arith.mulf %33, %18 : vector<8x32xf32>
    %35 = arith.mulf %29, %31 : vector<8x4xf32>
    %cst_20 = arith.constant dense<0.000000e+00> : vector<8x32xf32>
    %36 = tpu.matmul %35, %1, %cst_20 {dimension_numbers = #tpu.dot_dimension_numbers<[1], [0], [0], [1], [0, 0, 1, 1], [], []>} : vector<8x4xf32>, vector<4x32xf32>, vector<8x32xf32> -> vector<8x32xf32>
    %37 = arith.mulf %36, %20 : vector<8x32xf32>
    %38 = arith.addf %34, %37 : vector<8x32xf32>
    %c0_21 = arith.constant 0 : index
    %c0_22 = arith.constant 0 : index
    %c0_23 = arith.constant 0 : index
    %39 = vector.load %arg9[%c0_21, %c0_22, %c0_23] : memref<2x32x32xbf16, #tpu.memory_space<vmem>>, vector<1x32x32xbf16>
    %40 = vector.shape_cast %39 : vector<1x32x32xbf16> to vector<32x32xbf16>
    %41 = arith.truncf %38 : vector<8x32xf32> to vector<8x32xbf16>
    %cst_24 = arith.constant dense<0.000000e+00> : vector<8x32xf32>
    %42 = tpu.matmul %41, %40, %cst_24 {dimension_numbers = #tpu.dot_dimension_numbers<[1], [0], [0], [1], [0, 0, 1, 1], [], []>} : vector<8x32xbf16>, vector<32x32xbf16>, vector<8x32xf32> -> vector<8x32xf32>
    %c0_25 = arith.constant 0 : index
    %c0_26 = arith.constant 0 : index
    %c0_27 = arith.constant 0 : index
    %43 = vector.load %arg10[%c0_25, %c0_26, %c0_27] : memref<2x1x32xf32, #tpu.memory_space<vmem>>, vector<1x1x32xf32>
    %44 = vector.shape_cast %43 : vector<1x1x32xf32> to vector<1x32xf32>
    %45 = vector.broadcast %44 : vector<1x32xf32> to vector<8x32xf32>
    %46 = arith.addf %42, %45 : vector<8x32xf32>
    %47 = arith.addf %7, %46 : vector<8x32xf32>
    %c0_28 = arith.constant 0 : index
    %c0_29 = arith.constant 0 : index
    %c0_30 = arith.constant 0 : index
    %48 = vector.load %arg11[%c0_28, %c0_29, %c0_30] : memref<2x1x32xf32, #tpu.memory_space<vmem>>, vector<1x1x32xf32>
    %49 = vector.shape_cast %48 : vector<1x1x32xf32> to vector<1x32xf32>
    %c0_31 = arith.constant 0 : index
    %c0_32 = arith.constant 0 : index
    %c0_33 = arith.constant 0 : index
    %50 = vector.load %arg12[%c0_31, %c0_32, %c0_33] : memref<2x1x32xf32, #tpu.memory_space<vmem>>, vector<1x1x32xf32>
    %51 = vector.shape_cast %50 : vector<1x1x32xf32> to vector<1x32xf32>
    %cst_34 = arith.constant dense<0.000000e+00> : vector<8xf32>
    %52 = vector.multi_reduction <add>, %47, %cst_34 [1] : vector<8x32xf32> to vector<8xf32>
    %53 = vector.shape_cast %52 : vector<8xf32> to vector<8x1xf32>
    %cst_35 = arith.constant 3.200000e+01 : f32
    %54 = vector.broadcast %cst_35 : f32 to vector<8x1xf32>
    %55 = arith.divf %53, %54 : vector<8x1xf32>
    %56 = vector.broadcast %55 : vector<8x1xf32> to vector<8x32xf32>
    %57 = arith.subf %47, %56 : vector<8x32xf32>
    %58 = arith.mulf %57, %57 : vector<8x32xf32>
    %cst_36 = arith.constant dense<0.000000e+00> : vector<8xf32>
    %59 = vector.multi_reduction <add>, %58, %cst_36 [1] : vector<8x32xf32> to vector<8xf32>
    %60 = vector.shape_cast %59 : vector<8xf32> to vector<8x1xf32>
    %cst_37 = arith.constant 3.200000e+01 : f32
    %61 = vector.broadcast %cst_37 : f32 to vector<8x1xf32>
    %62 = arith.divf %60, %61 : vector<8x1xf32>
    %63 = vector.broadcast %55 : vector<8x1xf32> to vector<8x32xf32>
    %64 = arith.subf %47, %63 : vector<8x32xf32>
    %cst_38 = arith.constant 9.99999974E-6 : f32
    %65 = vector.broadcast %cst_38 : f32 to vector<8x1xf32>
    %66 = arith.addf %62, %65 : vector<8x1xf32>
    %67 = math.rsqrt %66 : vector<8x1xf32>
    %68 = vector.broadcast %67 : vector<8x1xf32> to vector<8x32xf32>
    %69 = arith.mulf %64, %68 : vector<8x32xf32>
    %70 = vector.broadcast %49 : vector<1x32xf32> to vector<8x32xf32>
    %71 = arith.mulf %69, %70 : vector<8x32xf32>
    %72 = vector.broadcast %51 : vector<1x32xf32> to vector<8x32xf32>
    %73 = arith.addf %71, %72 : vector<8x32xf32>
    %c0_39 = arith.constant 0 : index
    %c0_40 = arith.constant 0 : index
    %c0_41 = arith.constant 0 : index
    %74 = vector.load %arg13[%c0_39, %c0_40, %c0_41] : memref<2x32x128xbf16, #tpu.memory_space<vmem>>, vector<1x32x128xbf16>
    %75 = vector.shape_cast %74 : vector<1x32x128xbf16> to vector<32x128xbf16>
    %76 = arith.truncf %73 : vector<8x32xf32> to vector<8x32xbf16>
    %cst_42 = arith.constant dense<0.000000e+00> : vector<8x128xf32>
    %77 = tpu.matmul %76, %75, %cst_42 {dimension_numbers = #tpu.dot_dimension_numbers<[1], [0], [0], [1], [0, 0, 1, 1], [], []>} : vector<8x32xbf16>, vector<32x128xbf16>, vector<8x128xf32> -> vector<8x128xf32>
    %c0_43 = arith.constant 0 : index
    %c0_44 = arith.constant 0 : index
    %c0_45 = arith.constant 0 : index
    %78 = vector.load %arg14[%c0_43, %c0_44, %c0_45] : memref<2x1x128xf32, #tpu.memory_space<vmem>>, vector<1x1x128xf32>
    %79 = vector.shape_cast %78 : vector<1x1x128xf32> to vector<1x128xf32>
    %80 = vector.broadcast %79 : vector<1x128xf32> to vector<8x128xf32>
    %81 = arith.addf %77, %80 : vector<8x128xf32>
    %cst_46 = arith.constant 0.000000e+00 : f32
    %82 = vector.broadcast %cst_46 : f32 to vector<8x128xf32>
    %83 = arith.maximumf %81, %82 : vector<8x128xf32>
    %c0_47 = arith.constant 0 : index
    %c0_48 = arith.constant 0 : index
    %c0_49 = arith.constant 0 : index
    %84 = vector.load %arg15[%c0_47, %c0_48, %c0_49] : memref<2x128x32xbf16, #tpu.memory_space<vmem>>, vector<1x128x32xbf16>
    %85 = vector.shape_cast %84 : vector<1x128x32xbf16> to vector<128x32xbf16>
    %86 = arith.truncf %83 : vector<8x128xf32> to vector<8x128xbf16>
    %cst_50 = arith.constant dense<0.000000e+00> : vector<8x32xf32>
    %87 = tpu.matmul %86, %85, %cst_50 {dimension_numbers = #tpu.dot_dimension_numbers<[1], [0], [0], [1], [0, 0, 1, 1], [], []>} : vector<8x128xbf16>, vector<128x32xbf16>, vector<8x32xf32> -> vector<8x32xf32>
    %c0_51 = arith.constant 0 : index
    %c0_52 = arith.constant 0 : index
    %c0_53 = arith.constant 0 : index
    %88 = vector.load %arg16[%c0_51, %c0_52, %c0_53] : memref<2x1x32xf32, #tpu.memory_space<vmem>>, vector<1x1x32xf32>
    %89 = vector.shape_cast %88 : vector<1x1x32xf32> to vector<1x32xf32>
    %90 = vector.broadcast %89 : vector<1x32xf32> to vector<8x32xf32>
    %91 = arith.addf %87, %90 : vector<8x32xf32>
    %92 = arith.addf %73, %91 : vector<8x32xf32>
    %c0_54 = arith.constant 0 : index
    %c0_55 = arith.constant 0 : index
    %c0_56 = arith.constant 0 : index
    %93 = vector.load %arg17[%c0_54, %c0_55, %c0_56] : memref<2x1x32xf32, #tpu.memory_space<vmem>>, vector<1x1x32xf32>
    %94 = vector.shape_cast %93 : vector<1x1x32xf32> to vector<1x32xf32>
    %c0_57 = arith.constant 0 : index
    %c0_58 = arith.constant 0 : index
    %c0_59 = arith.constant 0 : index
    %95 = vector.load %arg18[%c0_57, %c0_58, %c0_59] : memref<2x1x32xf32, #tpu.memory_space<vmem>>, vector<1x1x32xf32>
    %96 = vector.shape_cast %95 : vector<1x1x32xf32> to vector<1x32xf32>
    %cst_60 = arith.constant dense<0.000000e+00> : vector<8xf32>
    %97 = vector.multi_reduction <add>, %92, %cst_60 [1] : vector<8x32xf32> to vector<8xf32>
    %98 = vector.shape_cast %97 : vector<8xf32> to vector<8x1xf32>
    %cst_61 = arith.constant 3.200000e+01 : f32
    %99 = vector.broadcast %cst_61 : f32 to vector<8x1xf32>
    %100 = arith.divf %98, %99 : vector<8x1xf32>
    %101 = vector.broadcast %100 : vector<8x1xf32> to vector<8x32xf32>
    %102 = arith.subf %92, %101 : vector<8x32xf32>
    %103 = arith.mulf %102, %102 : vector<8x32xf32>
    %cst_62 = arith.constant dense<0.000000e+00> : vector<8xf32>
    %104 = vector.multi_reduction <add>, %103, %cst_62 [1] : vector<8x32xf32> to vector<8xf32>
    %105 = vector.shape_cast %104 : vector<8xf32> to vector<8x1xf32>
    %cst_63 = arith.constant 3.200000e+01 : f32
    %106 = vector.broadcast %cst_63 : f32 to vector<8x1xf32>
    %107 = arith.divf %105, %106 : vector<8x1xf32>
    %108 = vector.broadcast %100 : vector<8x1xf32> to vector<8x32xf32>
    %109 = arith.subf %92, %108 : vector<8x32xf32>
    %cst_64 = arith.constant 9.99999974E-6 : f32
    %110 = vector.broadcast %cst_64 : f32 to vector<8x1xf32>
    %111 = arith.addf %107, %110 : vector<8x1xf32>
    %112 = math.rsqrt %111 : vector<8x1xf32>
    %113 = vector.broadcast %112 : vector<8x1xf32> to vector<8x32xf32>
    %114 = arith.mulf %109, %113 : vector<8x32xf32>
    %115 = vector.broadcast %94 : vector<1x32xf32> to vector<8x32xf32>
    %116 = arith.mulf %114, %115 : vector<8x32xf32>
    %117 = vector.broadcast %96 : vector<1x32xf32> to vector<8x32xf32>
    %118 = arith.addf %116, %117 : vector<8x32xf32>
    %c1 = arith.constant 1 : index
    %c0_65 = arith.constant 0 : index
    %c0_66 = arith.constant 0 : index
    %119 = vector.load %arg7[%c1, %c0_65, %c0_66] : memref<2x32x96xbf16, #tpu.memory_space<vmem>>, vector<1x32x96xbf16>
    %120 = vector.shape_cast %119 : vector<1x32x96xbf16> to vector<32x96xbf16>
    %121 = arith.truncf %118 : vector<8x32xf32> to vector<8x32xbf16>
    %cst_67 = arith.constant dense<0.000000e+00> : vector<8x96xf32>
    %122 = tpu.matmul %121, %120, %cst_67 {dimension_numbers = #tpu.dot_dimension_numbers<[1], [0], [0], [1], [0, 0, 1, 1], [], []>} : vector<8x32xbf16>, vector<32x96xbf16>, vector<8x96xf32> -> vector<8x96xf32>
    %c1_68 = arith.constant 1 : index
    %c0_69 = arith.constant 0 : index
    %c0_70 = arith.constant 0 : index
    %123 = vector.load %arg8[%c1_68, %c0_69, %c0_70] : memref<2x1x96xf32, #tpu.memory_space<vmem>>, vector<1x1x96xf32>
    %124 = vector.shape_cast %123 : vector<1x1x96xf32> to vector<1x96xf32>
    %125 = vector.broadcast %124 : vector<1x96xf32> to vector<8x96xf32>
    %126 = arith.addf %122, %125 : vector<8x96xf32>
    %127 = vector.extract_strided_slice %126 {offsets = [0, 0], sizes = [8, 32], strides = [1, 1]} : vector<8x96xf32> to vector<8x32xf32>
    %128 = vector.extract_strided_slice %126 {offsets = [0, 32], sizes = [8, 32], strides = [1, 1]} : vector<8x96xf32> to vector<8x32xf32>
    %129 = vector.extract_strided_slice %126 {offsets = [0, 64], sizes = [8, 32], strides = [1, 1]} : vector<8x96xf32> to vector<8x32xf32>
    %c4_i32_71 = arith.constant 4 : i32
    %130 = tpu.dynamic_rotate %128 by %c4_i32_71 dim 0 : vector<8x32xf32>, i32 -> vector<8x32xf32>
    %c4_i32_72 = arith.constant 4 : i32
    %131 = tpu.dynamic_rotate %129 by %c4_i32_72 dim 0 : vector<8x32xf32>, i32 -> vector<8x32xf32>
    %132 = arith.mulf %127, %128 : vector<8x32xf32>
    %cst_73 = arith.constant dense<0.000000e+00> : vector<8x4xf32>
    %133 = tpu.matmul %132, %0, %cst_73 {dimension_numbers = #tpu.dot_dimension_numbers<[1], [0], [0], [1], [0, 0, 1, 1], [], []>} : vector<8x32xf32>, vector<32x4xf32>, vector<8x4xf32> -> vector<8x4xf32>
    %134 = arith.mulf %127, %130 : vector<8x32xf32>
    %cst_74 = arith.constant dense<0.000000e+00> : vector<8x4xf32>
    %135 = tpu.matmul %134, %0, %cst_74 {dimension_numbers = #tpu.dot_dimension_numbers<[1], [0], [0], [1], [0, 0, 1, 1], [], []>} : vector<8x32xf32>, vector<32x4xf32>, vector<8x4xf32> -> vector<8x4xf32>
    %136 = arith.maximumf %133, %135 : vector<8x4xf32>
    %137 = arith.subf %133, %136 : vector<8x4xf32>
    %138 = math.exp %137 : vector<8x4xf32>
    %139 = arith.subf %135, %136 : vector<8x4xf32>
    %140 = math.exp %139 : vector<8x4xf32>
    %141 = arith.addf %138, %140 : vector<8x4xf32>
    %142 = tpu.reciprocal %141 {approx = true} : vector<8x4xf32> -> vector<8x4xf32>
    %143 = arith.mulf %138, %142 : vector<8x4xf32>
    %cst_75 = arith.constant dense<0.000000e+00> : vector<8x32xf32>
    %144 = tpu.matmul %143, %1, %cst_75 {dimension_numbers = #tpu.dot_dimension_numbers<[1], [0], [0], [1], [0, 0, 1, 1], [], []>} : vector<8x4xf32>, vector<4x32xf32>, vector<8x32xf32> -> vector<8x32xf32>
    %145 = arith.mulf %144, %129 : vector<8x32xf32>
    %146 = arith.mulf %140, %142 : vector<8x4xf32>
    %cst_76 = arith.constant dense<0.000000e+00> : vector<8x32xf32>
    %147 = tpu.matmul %146, %1, %cst_76 {dimension_numbers = #tpu.dot_dimension_numbers<[1], [0], [0], [1], [0, 0, 1, 1], [], []>} : vector<8x4xf32>, vector<4x32xf32>, vector<8x32xf32> -> vector<8x32xf32>
    %148 = arith.mulf %147, %131 : vector<8x32xf32>
    %149 = arith.addf %145, %148 : vector<8x32xf32>
    %c1_77 = arith.constant 1 : index
    %c0_78 = arith.constant 0 : index
    %c0_79 = arith.constant 0 : index
    %150 = vector.load %arg9[%c1_77, %c0_78, %c0_79] : memref<2x32x32xbf16, #tpu.memory_space<vmem>>, vector<1x32x32xbf16>
    %151 = vector.shape_cast %150 : vector<1x32x32xbf16> to vector<32x32xbf16>
    %152 = arith.truncf %149 : vector<8x32xf32> to vector<8x32xbf16>
    %cst_80 = arith.constant dense<0.000000e+00> : vector<8x32xf32>
    %153 = tpu.matmul %152, %151, %cst_80 {dimension_numbers = #tpu.dot_dimension_numbers<[1], [0], [0], [1], [0, 0, 1, 1], [], []>} : vector<8x32xbf16>, vector<32x32xbf16>, vector<8x32xf32> -> vector<8x32xf32>
    %c1_81 = arith.constant 1 : index
    %c0_82 = arith.constant 0 : index
    %c0_83 = arith.constant 0 : index
    %154 = vector.load %arg10[%c1_81, %c0_82, %c0_83] : memref<2x1x32xf32, #tpu.memory_space<vmem>>, vector<1x1x32xf32>
    %155 = vector.shape_cast %154 : vector<1x1x32xf32> to vector<1x32xf32>
    %156 = vector.broadcast %155 : vector<1x32xf32> to vector<8x32xf32>
    %157 = arith.addf %153, %156 : vector<8x32xf32>
    %158 = arith.addf %118, %157 : vector<8x32xf32>
    %c1_84 = arith.constant 1 : index
    %c0_85 = arith.constant 0 : index
    %c0_86 = arith.constant 0 : index
    %159 = vector.load %arg11[%c1_84, %c0_85, %c0_86] : memref<2x1x32xf32, #tpu.memory_space<vmem>>, vector<1x1x32xf32>
    %160 = vector.shape_cast %159 : vector<1x1x32xf32> to vector<1x32xf32>
    %c1_87 = arith.constant 1 : index
    %c0_88 = arith.constant 0 : index
    %c0_89 = arith.constant 0 : index
    %161 = vector.load %arg12[%c1_87, %c0_88, %c0_89] : memref<2x1x32xf32, #tpu.memory_space<vmem>>, vector<1x1x32xf32>
    %162 = vector.shape_cast %161 : vector<1x1x32xf32> to vector<1x32xf32>
    %cst_90 = arith.constant dense<0.000000e+00> : vector<8xf32>
    %163 = vector.multi_reduction <add>, %158, %cst_90 [1] : vector<8x32xf32> to vector<8xf32>
    %164 = vector.shape_cast %163 : vector<8xf32> to vector<8x1xf32>
    %cst_91 = arith.constant 3.200000e+01 : f32
    %165 = vector.broadcast %cst_91 : f32 to vector<8x1xf32>
    %166 = arith.divf %164, %165 : vector<8x1xf32>
    %167 = vector.broadcast %166 : vector<8x1xf32> to vector<8x32xf32>
    %168 = arith.subf %158, %167 : vector<8x32xf32>
    %169 = arith.mulf %168, %168 : vector<8x32xf32>
    %cst_92 = arith.constant dense<0.000000e+00> : vector<8xf32>
    %170 = vector.multi_reduction <add>, %169, %cst_92 [1] : vector<8x32xf32> to vector<8xf32>
    %171 = vector.shape_cast %170 : vector<8xf32> to vector<8x1xf32>
    %cst_93 = arith.constant 3.200000e+01 : f32
    %172 = vector.broadcast %cst_93 : f32 to vector<8x1xf32>
    %173 = arith.divf %171, %172 : vector<8x1xf32>
    %174 = vector.broadcast %166 : vector<8x1xf32> to vector<8x32xf32>
    %175 = arith.subf %158, %174 : vector<8x32xf32>
    %cst_94 = arith.constant 9.99999974E-6 : f32
    %176 = vector.broadcast %cst_94 : f32 to vector<8x1xf32>
    %177 = arith.addf %173, %176 : vector<8x1xf32>
    %178 = math.rsqrt %177 : vector<8x1xf32>
    %179 = vector.broadcast %178 : vector<8x1xf32> to vector<8x32xf32>
    %180 = arith.mulf %175, %179 : vector<8x32xf32>
    %181 = vector.broadcast %160 : vector<1x32xf32> to vector<8x32xf32>
    %182 = arith.mulf %180, %181 : vector<8x32xf32>
    %183 = vector.broadcast %162 : vector<1x32xf32> to vector<8x32xf32>
    %184 = arith.addf %182, %183 : vector<8x32xf32>
    %c1_95 = arith.constant 1 : index
    %c0_96 = arith.constant 0 : index
    %c0_97 = arith.constant 0 : index
    %185 = vector.load %arg13[%c1_95, %c0_96, %c0_97] : memref<2x32x128xbf16, #tpu.memory_space<vmem>>, vector<1x32x128xbf16>
    %186 = vector.shape_cast %185 : vector<1x32x128xbf16> to vector<32x128xbf16>
    %187 = arith.truncf %184 : vector<8x32xf32> to vector<8x32xbf16>
    %cst_98 = arith.constant dense<0.000000e+00> : vector<8x128xf32>
    %188 = tpu.matmul %187, %186, %cst_98 {dimension_numbers = #tpu.dot_dimension_numbers<[1], [0], [0], [1], [0, 0, 1, 1], [], []>} : vector<8x32xbf16>, vector<32x128xbf16>, vector<8x128xf32> -> vector<8x128xf32>
    %c1_99 = arith.constant 1 : index
    %c0_100 = arith.constant 0 : index
    %c0_101 = arith.constant 0 : index
    %189 = vector.load %arg14[%c1_99, %c0_100, %c0_101] : memref<2x1x128xf32, #tpu.memory_space<vmem>>, vector<1x1x128xf32>
    %190 = vector.shape_cast %189 : vector<1x1x128xf32> to vector<1x128xf32>
    %191 = vector.broadcast %190 : vector<1x128xf32> to vector<8x128xf32>
    %192 = arith.addf %188, %191 : vector<8x128xf32>
    %cst_102 = arith.constant 0.000000e+00 : f32
    %193 = vector.broadcast %cst_102 : f32 to vector<8x128xf32>
    %194 = arith.maximumf %192, %193 : vector<8x128xf32>
    %c1_103 = arith.constant 1 : index
    %c0_104 = arith.constant 0 : index
    %c0_105 = arith.constant 0 : index
    %195 = vector.load %arg15[%c1_103, %c0_104, %c0_105] : memref<2x128x32xbf16, #tpu.memory_space<vmem>>, vector<1x128x32xbf16>
    %196 = vector.shape_cast %195 : vector<1x128x32xbf16> to vector<128x32xbf16>
    %197 = arith.truncf %194 : vector<8x128xf32> to vector<8x128xbf16>
    %cst_106 = arith.constant dense<0.000000e+00> : vector<8x32xf32>
    %198 = tpu.matmul %197, %196, %cst_106 {dimension_numbers = #tpu.dot_dimension_numbers<[1], [0], [0], [1], [0, 0, 1, 1], [], []>} : vector<8x128xbf16>, vector<128x32xbf16>, vector<8x32xf32> -> vector<8x32xf32>
    %c1_107 = arith.constant 1 : index
    %c0_108 = arith.constant 0 : index
    %c0_109 = arith.constant 0 : index
    %199 = vector.load %arg16[%c1_107, %c0_108, %c0_109] : memref<2x1x32xf32, #tpu.memory_space<vmem>>, vector<1x1x32xf32>
    %200 = vector.shape_cast %199 : vector<1x1x32xf32> to vector<1x32xf32>
    %201 = vector.broadcast %200 : vector<1x32xf32> to vector<8x32xf32>
    %202 = arith.addf %198, %201 : vector<8x32xf32>
    %203 = arith.addf %184, %202 : vector<8x32xf32>
    %c1_110 = arith.constant 1 : index
    %c0_111 = arith.constant 0 : index
    %c0_112 = arith.constant 0 : index
    %204 = vector.load %arg17[%c1_110, %c0_111, %c0_112] : memref<2x1x32xf32, #tpu.memory_space<vmem>>, vector<1x1x32xf32>
    %205 = vector.shape_cast %204 : vector<1x1x32xf32> to vector<1x32xf32>
    %c1_113 = arith.constant 1 : index
    %c0_114 = arith.constant 0 : index
    %c0_115 = arith.constant 0 : index
    %206 = vector.load %arg18[%c1_113, %c0_114, %c0_115] : memref<2x1x32xf32, #tpu.memory_space<vmem>>, vector<1x1x32xf32>
    %207 = vector.shape_cast %206 : vector<1x1x32xf32> to vector<1x32xf32>
    %cst_116 = arith.constant dense<0.000000e+00> : vector<8xf32>
    %208 = vector.multi_reduction <add>, %203, %cst_116 [1] : vector<8x32xf32> to vector<8xf32>
    %209 = vector.shape_cast %208 : vector<8xf32> to vector<8x1xf32>
    %cst_117 = arith.constant 3.200000e+01 : f32
    %210 = vector.broadcast %cst_117 : f32 to vector<8x1xf32>
    %211 = arith.divf %209, %210 : vector<8x1xf32>
    %212 = vector.broadcast %211 : vector<8x1xf32> to vector<8x32xf32>
    %213 = arith.subf %203, %212 : vector<8x32xf32>
    %214 = arith.mulf %213, %213 : vector<8x32xf32>
    %cst_118 = arith.constant dense<0.000000e+00> : vector<8xf32>
    %215 = vector.multi_reduction <add>, %214, %cst_118 [1] : vector<8x32xf32> to vector<8xf32>
    %216 = vector.shape_cast %215 : vector<8xf32> to vector<8x1xf32>
    %cst_119 = arith.constant 3.200000e+01 : f32
    %217 = vector.broadcast %cst_119 : f32 to vector<8x1xf32>
    %218 = arith.divf %216, %217 : vector<8x1xf32>
    %219 = vector.broadcast %211 : vector<8x1xf32> to vector<8x32xf32>
    %220 = arith.subf %203, %219 : vector<8x32xf32>
    %cst_120 = arith.constant 9.99999974E-6 : f32
    %221 = vector.broadcast %cst_120 : f32 to vector<8x1xf32>
    %222 = arith.addf %218, %221 : vector<8x1xf32>
    %223 = math.rsqrt %222 : vector<8x1xf32>
    %224 = vector.broadcast %223 : vector<8x1xf32> to vector<8x32xf32>
    %225 = arith.mulf %220, %224 : vector<8x32xf32>
    %226 = vector.broadcast %205 : vector<1x32xf32> to vector<8x32xf32>
    %227 = arith.mulf %225, %226 : vector<8x32xf32>
    %228 = vector.broadcast %207 : vector<1x32xf32> to vector<8x32xf32>
    %229 = arith.addf %227, %228 : vector<8x32xf32>
    %c0_121 = arith.constant 0 : index
    %c0_122 = arith.constant 0 : index
    %230 = vector.load %arg6[%c0_121, %c0_122] : memref<2x8xf32, #tpu.memory_space<vmem>>, vector<2x8xf32>
    %cst_123 = arith.constant dense<0.000000e+00> : vector<2x32xf32>
    %231 = tpu.matmul %230, %229, %cst_123 {dimension_numbers = #tpu.dot_dimension_numbers<[1], [0], [0], [1], [0, 0, 1, 1], [], []>} : vector<2x8xf32>, vector<8x32xf32>, vector<2x32xf32> -> vector<2x32xf32>
    %c0_124 = arith.constant 0 : index
    %c0_125 = arith.constant 0 : index
    %232 = vector.load %arg19[%c0_124, %c0_125] : memref<32x32xbf16, #tpu.memory_space<vmem>>, vector<32x32xbf16>
    %233 = arith.truncf %231 : vector<2x32xf32> to vector<2x32xbf16>
    %cst_126 = arith.constant dense<0.000000e+00> : vector<2x32xf32>
    %234 = tpu.matmul %233, %232, %cst_126 {dimension_numbers = #tpu.dot_dimension_numbers<[1], [0], [0], [1], [0, 0, 1, 1], [], []>} : vector<2x32xbf16>, vector<32x32xbf16>, vector<2x32xf32> -> vector<2x32xf32>
    %c0_127 = arith.constant 0 : index
    %c0_128 = arith.constant 0 : index
    %235 = vector.load %arg20[%c0_127, %c0_128] : memref<1x32xf32, #tpu.memory_space<vmem>>, vector<1x32xf32>
    %236 = vector.broadcast %235 : vector<1x32xf32> to vector<2x32xf32>
    %237 = arith.addf %234, %236 : vector<2x32xf32>
    %238 = arith.negf %237 : vector<2x32xf32>
    %239 = math.exp %238 : vector<2x32xf32>
    %cst_129 = arith.constant 1.000000e+00 : f32
    %240 = vector.broadcast %cst_129 : f32 to vector<2x32xf32>
    %241 = arith.addf %240, %239 : vector<2x32xf32>
    %242 = arith.divf %240, %241 : vector<2x32xf32>
    %c0_130 = arith.constant 0 : index
    %c0_131 = arith.constant 0 : index
    %243 = vector.load %arg21[%c0_130, %c0_131] : memref<2x32xf32, #tpu.memory_space<vmem>>, vector<2x32xf32>
    tpu.vector_store %arg21[%c0_130, %c0_131], %242 {strides = array<i32>} : memref<2x32xf32, #tpu.memory_space<vmem>>, vector<2x32xf32>,
    return
  }
  func.func @transform_0(%arg0: i32) -> (i32, i32) {
    %c0_i32 = arith.constant 0 : i32
    %c0_i32_0 = arith.constant 0 : i32
    %c0_i32_1 = arith.constant 0 : i32
    return %c0_i32, %c0_i32_0 : i32, i32
  }
  func.func @transform_1(%arg0: i32) -> (i32, i32) {
    %c0_i32 = arith.constant 0 : i32
    %c0_i32_0 = arith.constant 0 : i32
    %c0_i32_1 = arith.constant 0 : i32
    return %c0_i32, %c0_i32_0 : i32, i32
  }
  func.func @transform_2(%arg0: i32) -> (i32, i32) {
    %c0_i32 = arith.constant 0 : i32
    %c0_i32_0 = arith.constant 0 : i32
    %c0_i32_1 = arith.constant 0 : i32
    return %c0_i32, %c0_i32_0 : i32, i32
  }
  func.func @transform_3(%arg0: i32) -> (i32, i32) {
    %c0_i32 = arith.constant 0 : i32
    %c0_i32_0 = arith.constant 0 : i32
    %c0_i32_1 = arith.constant 0 : i32
    return %c0_i32, %c0_i32_0 : i32, i32
  }
  func.func @transform_4(%arg0: i32) -> (i32, i32) {
    %c0_i32 = arith.constant 0 : i32
    %c0_i32_0 = arith.constant 0 : i32
    %c0_i32_1 = arith.constant 0 : i32
    return %c0_i32, %c0_i32_0 : i32, i32
  }
  func.func @transform_5(%arg0: i32) -> (i32, i32) {
    %c0_i32 = arith.constant 0 : i32
    %c0_i32_0 = arith.constant 0 : i32
    %c0_i32_1 = arith.constant 0 : i32
    return %c0_i32, %c0_i32_0 : i32, i32
  }
  func.func @transform_6(%arg0: i32) -> (i32, i32, i32) {
    %c0_i32 = arith.constant 0 : i32
    %c0_i32_0 = arith.constant 0 : i32
    %c0_i32_1 = arith.constant 0 : i32
    %c0_i32_2 = arith.constant 0 : i32
    return %c0_i32, %c0_i32_0, %c0_i32_1 : i32, i32, i32
  }
  func.func @transform_7(%arg0: i32) -> (i32, i32, i32) {
    %c0_i32 = arith.constant 0 : i32
    %c0_i32_0 = arith.constant 0 : i32
    %c0_i32_1 = arith.constant 0 : i32
    %c0_i32_2 = arith.constant 0 : i32
    return %c0_i32, %c0_i32_0, %c0_i32_1 : i32, i32, i32
  }
  func.func @transform_8(%arg0: i32) -> (i32, i32, i32) {
    %c0_i32 = arith.constant 0 : i32
    %c0_i32_0 = arith.constant 0 : i32
    %c0_i32_1 = arith.constant 0 : i32
    %c0_i32_2 = arith.constant 0 : i32
    return %c0_i32, %c0_i32_0, %c0_i32_1 : i32, i32, i32
  }
  func.func @transform_9(%arg0: i32) -> (i32, i32, i32) {
    %c0_i32 = arith.constant 0 : i32
    %c0_i32_0 = arith.constant 0 : i32
    %c0_i32_1 = arith.constant 0 : i32
    %c0_i32_2 = arith.constant 0 : i32
    return %c0_i32, %c0_i32_0, %c0_i32_1 : i32, i32, i32
  }
  func.func @transform_10(%arg0: i32) -> (i32, i32, i32) {
    %c0_i32 = arith.constant 0 : i32
    %c0_i32_0 = arith.constant 0 : i32
    %c0_i32_1 = arith.constant 0 : i32
    %c0_i32_2 = arith.constant 0 : i32
    return %c0_i32, %c0_i32_0, %c0_i32_1 : i32, i32, i32
  }
  func.func @transform_11(%arg0: i32) -> (i32, i32, i32) {
    %c0_i32 = arith.constant 0 : i32
    %c0_i32_0 = arith.constant 0 : i32
    %c0_i32_1 = arith.constant 0 : i32
    %c0_i32_2 = arith.constant 0 : i32
    return %c0_i32, %c0_i32_0, %c0_i32_1 : i32, i32, i32
  }
  func.func @transform_12(%arg0: i32) -> (i32, i32, i32) {
    %c0_i32 = arith.constant 0 : i32
    %c0_i32_0 = arith.constant 0 : i32
    %c0_i32_1 = arith.constant 0 : i32
    %c0_i32_2 = arith.constant 0 : i32
    return %c0_i32, %c0_i32_0, %c0_i32_1 : i32, i32, i32
  }
  func.func @transform_13(%arg0: i32) -> (i32, i32, i32) {
    %c0_i32 = arith.constant 0 : i32
    %c0_i32_0 = arith.constant 0 : i32
    %c0_i32_1 = arith.constant 0 : i32
    %c0_i32_2 = arith.constant 0 : i32
    return %c0_i32, %c0_i32_0, %c0_i32_1 : i32, i32, i32
  }
  func.func @transform_14(%arg0: i32) -> (i32, i32, i32) {
    %c0_i32 = arith.constant 0 : i32
    %c0_i32_0 = arith.constant 0 : i32
    %c0_i32_1 = arith.constant 0 : i32
    %c0_i32_2 = arith.constant 0 : i32
    return %c0_i32, %c0_i32_0, %c0_i32_1 : i32, i32, i32
  }
  func.func @transform_15(%arg0: i32) -> (i32, i32, i32) {
    %c0_i32 = arith.constant 0 : i32
    %c0_i32_0 = arith.constant 0 : i32
    %c0_i32_1 = arith.constant 0 : i32
    %c0_i32_2 = arith.constant 0 : i32
    return %c0_i32, %c0_i32_0, %c0_i32_1 : i32, i32, i32
  }
  func.func @transform_16(%arg0: i32) -> (i32, i32, i32) {
    %c0_i32 = arith.constant 0 : i32
    %c0_i32_0 = arith.constant 0 : i32
    %c0_i32_1 = arith.constant 0 : i32
    %c0_i32_2 = arith.constant 0 : i32
    return %c0_i32, %c0_i32_0, %c0_i32_1 : i32, i32, i32
  }
  func.func @transform_17(%arg0: i32) -> (i32, i32, i32) {
    %c0_i32 = arith.constant 0 : i32
    %c0_i32_0 = arith.constant 0 : i32
    %c0_i32_1 = arith.constant 0 : i32
    %c0_i32_2 = arith.constant 0 : i32
    return %c0_i32, %c0_i32_0, %c0_i32_1 : i32, i32, i32
  }
  func.func @transform_18(%arg0: i32) -> (i32, i32) {
    %c0_i32 = arith.constant 0 : i32
    %c0_i32_0 = arith.constant 0 : i32
    %c0_i32_1 = arith.constant 0 : i32
    return %c0_i32, %c0_i32_0 : i32, i32
  }
  func.func @transform_19(%arg0: i32) -> (i32, i32) {
    %c0_i32 = arith.constant 0 : i32
    %c0_i32_0 = arith.constant 0 : i32
    %c0_i32_1 = arith.constant 0 : i32
    return %c0_i32, %c0_i32_0 : i32, i32
  }
  func.func @transform_20(%arg0: i32) -> (i32, i32) {
    %c0_i32 = arith.constant 0 : i32
    %c0_i32_0 = arith.constant 0 : i32
    %c0_i32_1 = arith.constant 0 : i32
    return %c0_i32, %c0_i32_0 : i32, i32
  }
}

</mosaic_0001>

<llo_original>
// kernel: custom_image_embedding_forward.1
$region0: #{custom_image_embedding_forward.1}
  #allocation0 [shape = 'u32[]', space=smem, size = 0x4, offset = 0x4, fixed_abs, tag = 'smem constant byte address 0x4 - core index']
  #allocation1 [shape = 'u32[72,128]{1,0:T(1,128)}', space=vmem, size = 0x9000, scoped, tag = 'internal scratch']
  %s0 = inlined_call_operand.vmem [shape: f32[8,192], index: 0, kind: input, shape index: {}]
  %s1 = inlined_call_operand.vmem [shape: bf16[192,32], index: 1, kind: input, shape index: {}]
  %s2 = inlined_call_operand.vmem [shape: f32[8,32], index: 2, kind: input, shape index: {}]
  %s3 = inlined_call_operand.vmem [shape: f32[32,4], index: 3, kind: input, shape index: {}]
  %s4 = inlined_call_operand.vmem [shape: f32[4,32], index: 4, kind: input, shape index: {}]
  %s5 = inlined_call_operand.vmem [shape: f32[2,8], index: 5, kind: input, shape index: {}]
  %s6 = inlined_call_operand.vmem [shape: bf16[2,32,96], index: 6, kind: input, shape index: {}]
  %s7 = inlined_call_operand.vmem [shape: f32[2,1,96], index: 7, kind: input, shape index: {}]
  %s8 = inlined_call_operand.vmem [shape: bf16[2,32,32], index: 8, kind: input, shape index: {}]
  %s9 = inlined_call_operand.vmem [shape: f32[2,1,32], index: 9, kind: input, shape index: {}]
  %s10 = inlined_call_operand.vmem [shape: f32[2,1,32], index: 10, kind: input, shape index: {}]
  %s11 = inlined_call_operand.vmem [shape: f32[2,1,32], index: 11, kind: input, shape index: {}]
  %s12 = inlined_call_operand.vmem [shape: bf16[2,32,128], index: 12, kind: input, shape index: {}]
  %s13 = inlined_call_operand.vmem [shape: f32[2,1,128], index: 13, kind: input, shape index: {}]
  %s14 = inlined_call_operand.vmem [shape: bf16[2,128,32], index: 14, kind: input, shape index: {}]
  %s15 = inlined_call_operand.vmem [shape: f32[2,1,32], index: 15, kind: input, shape index: {}]
  %s16 = inlined_call_operand.vmem [shape: f32[2,1,32], index: 16, kind: input, shape index: {}]
  %s17 = inlined_call_operand.vmem [shape: f32[2,1,32], index: 17, kind: input, shape index: {}]
  %s18 = inlined_call_operand.vmem [shape: bf16[32,32], index: 18, kind: input, shape index: {}]
  %s19 = inlined_call_operand.vmem [shape: f32[1,32], index: 19, kind: input, shape index: {}]
  %s20 = inlined_call_operand.hbm [shape: f32[2,32], index: 20, kind: output, shape index: {}]
  %s21 = sld [smem:[#allocation0]]
  $region90: #{custom_image_embedding_forward.1} parent=0
    _
  %s23 = ssub.s32 1, %s21
  %s24 = scalar_select 0, %s23, %s21
  $region1: #{custom_image_embedding_forward.1} parent=0
    #allocation2 [shape = 'u8[1024]{0}', space=vmem, size = 0x400, scoped, tag = 'output window, operand 0, single buffered']
    #allocation3 [shape = 's32[1]{0}', space=sflag, size = 0x4, scoped, tag = 'scoped memory for custom_image_embedding_forward.1']
    %25 = vsyncpa [#allocation3], 0
    // Predicated region
    $region2: #{custom_image_embedding_forward.1} parent=1 // pred_check
      _
    $region3: #{custom_image_embedding_forward.1} parent=1 // pred_check_branch
      %27 = sbr.rel (0) target = $region5
    $region4: #{custom_image_embedding_forward.1} parent=1 // pred_region
      _
    $region5: #{custom_image_embedding_forward.1} parent=1 // pred_fallthru
      _
    // Predicated region
    $region6: #{custom_image_embedding_forward.1} parent=1 // pred_check
      _
    $region7: #{custom_image_embedding_forward.1} parent=1 // pred_check_branch
      %29 = sbr.rel (0) target = $region9
    $region8: #{custom_image_embedding_forward.1} parent=1 // pred_region
      _
    $region9: #{custom_image_embedding_forward.1} parent=1 // pred_fallthru
      _
    // Predicated region
    $region10: #{custom_image_embedding_forward.1} parent=1 // pred_check
      _
    $region11: #{custom_image_embedding_forward.1} parent=1 // pred_check_branch
      %31 = sbr.rel (0) target = $region13
    $region12: #{custom_image_embedding_forward.1} parent=1 // pred_region
      _
    $region13: #{custom_image_embedding_forward.1} parent=1 // pred_fallthru
      _
    // Predicated region
    $region14: #{custom_image_embedding_forward.1} parent=1 // pred_check
      _
    $region15: #{custom_image_embedding_forward.1} parent=1 // pred_check_branch
      %33 = sbr.rel (0) target = $region17
    $region16: #{custom_image_embedding_forward.1} parent=1 // pred_region
      _
    $region17: #{custom_image_embedding_forward.1} parent=1 // pred_fallthru
      _
    // Predicated region
    $region18: #{custom_image_embedding_forward.1} parent=1 // pred_check
      _
    $region19: #{custom_image_embedding_forward.1} parent=1 // pred_check_branch
      %35 = sbr.rel (0) target = $region21
    $region20: #{custom_image_embedding_forward.1} parent=1 // pred_region
      _
    $region21: #{custom_image_embedding_forward.1} parent=1 // pred_fallthru
      _
    // Predicated region
    $region22: #{custom_image_embedding_forward.1} parent=1 // pred_check
      _
    $region23: #{custom_image_embedding_forward.1} parent=1 // pred_check_branch
      %37 = sbr.rel (0) target = $region25
    $region24: #{custom_image_embedding_forward.1} parent=1 // pred_region
      _
    $region25: #{custom_image_embedding_forward.1} parent=1 // pred_fallthru
      _
    // Predicated region
    $region26: #{custom_image_embedding_forward.1} parent=1 // pred_check
      _
    $region27: #{custom_image_embedding_forward.1} parent=1 // pred_check_branch
      %39 = sbr.rel (0) target = $region29
    $region28: #{custom_image_embedding_forward.1} parent=1 // pred_region
      _
    $region29: #{custom_image_embedding_forward.1} parent=1 // pred_fallthru
      _
    // Predicated region
    $region30: #{custom_image_embedding_forward.1} parent=1 // pred_check
      _
    $region31: #{custom_image_embedding_forward.1} parent=1 // pred_check_branch
      %41 = sbr.rel (0) target = $region33
    $region32: #{custom_image_embedding_forward.1} parent=1 // pred_region
      _
    $region33: #{custom_image_embedding_forward.1} parent=1 // pred_fallthru
      _
    // Predicated region
    $region34: #{custom_image_embedding_forward.1} parent=1 // pred_check
      _
    $region35: #{custom_image_embedding_forward.1} parent=1 // pred_check_branch
      %43 = sbr.rel (0) target = $region37
    $region36: #{custom_image_embedding_forward.1} parent=1 // pred_region
      _
    $region37: #{custom_image_embedding_forward.1} parent=1 // pred_fallthru
      _
    // Predicated region
    $region38: #{custom_image_embedding_forward.1} parent=1 // pred_check
      _
    $region39: #{custom_image_embedding_forward.1} parent=1 // pred_check_branch
      %45 = sbr.rel (0) target = $region41
    $region40: #{custom_image_embedding_forward.1} parent=1 // pred_region
      _
    $region41: #{custom_image_embedding_forward.1} parent=1 // pred_fallthru
      _
    // Predicated region
    $region42: #{custom_image_embedding_forward.1} parent=1 // pred_check
      _
    $region43: #{custom_image_embedding_forward.1} parent=1 // pred_check_branch
      %47 = sbr.rel (0) target = $region45
    $region44: #{custom_image_embedding_forward.1} parent=1 // pred_region
      _
    $region45: #{custom_image_embedding_forward.1} parent=1 // pred_fallthru
      _
    // Predicated region
    $region46: #{custom_image_embedding_forward.1} parent=1 // pred_check
      _
    $region47: #{custom_image_embedding_forward.1} parent=1 // pred_check_branch
      %49 = sbr.rel (0) target = $region49
    $region48: #{custom_image_embedding_forward.1} parent=1 // pred_region
      _
    $region49: #{custom_image_embedding_forward.1} parent=1 // pred_fallthru
      _
    // Predicated region
    $region50: #{custom_image_embedding_forward.1} parent=1 // pred_check
      _
    $region51: #{custom_image_embedding_forward.1} parent=1 // pred_check_branch
      %51 = sbr.rel (0) target = $region53
    $region52: #{custom_image_embedding_forward.1} parent=1 // pred_region
      _
    $region53: #{custom_image_embedding_forward.1} parent=1 // pred_fallthru
      _
    // Predicated region
    $region54: #{custom_image_embedding_forward.1} parent=1 // pred_check
      _
    $region55: #{custom_image_embedding_forward.1} parent=1 // pred_check_branch
      %53 = sbr.rel (0) target = $region57
    $region56: #{custom_image_embedding_forward.1} parent=1 // pred_region
      _
    $region57: #{custom_image_embedding_forward.1} parent=1 // pred_fallthru
      _
    // Predicated region
    $region58: #{custom_image_embedding_forward.1} parent=1 // pred_check
      _
    $region59: #{custom_image_embedding_forward.1} parent=1 // pred_check_branch
      %55 = sbr.rel (0) target = $region61
    $region60: #{custom_image_embedding_forward.1} parent=1 // pred_region
      _
    $region61: #{custom_image_embedding_forward.1} parent=1 // pred_fallthru
      _
    // Predicated region
    $region62: #{custom_image_embedding_forward.1} parent=1 // pred_check
      _
    $region63: #{custom_image_embedding_forward.1} parent=1 // pred_check_branch
      %57 = sbr.rel (0) target = $region65
    $region64: #{custom_image_embedding_forward.1} parent=1 // pred_region
      _
    $region65: #{custom_image_embedding_forward.1} parent=1 // pred_fallthru
      _
    // Predicated region
    $region66: #{custom_image_embedding_forward.1} parent=1 // pred_check
      _
    $region67: #{custom_image_embedding_forward.1} parent=1 // pred_check_branch
      %59 = sbr.rel (0) target = $region69
    $region68: #{custom_image_embedding_forward.1} parent=1 // pred_region
      _
    $region69: #{custom_image_embedding_forward.1} parent=1 // pred_fallthru
      _
    // Predicated region
    $region70: #{custom_image_embedding_forward.1} parent=1 // pred_check
      _
    $region71: #{custom_image_embedding_forward.1} parent=1 // pred_check_branch
      %61 = sbr.rel (0) target = $region73
    $region72: #{custom_image_embedding_forward.1} parent=1 // pred_region
      _
    $region73: #{custom_image_embedding_forward.1} parent=1 // pred_fallthru
      _
    // Predicated region
    $region74: #{custom_image_embedding_forward.1} parent=1 // pred_check
      _
    $region75: #{custom_image_embedding_forward.1} parent=1 // pred_check_branch
      %63 = sbr.rel (0) target = $region77
    $region76: #{custom_image_embedding_forward.1} parent=1 // pred_region
      _
    $region77: #{custom_image_embedding_forward.1} parent=1 // pred_fallthru
      _
    // Predicated region
    $region78: #{custom_image_embedding_forward.1} parent=1 // pred_check
      _
    $region79: #{custom_image_embedding_forward.1} parent=1 // pred_check_branch
      %65 = sbr.rel (0) target = $region81
    $region80: #{custom_image_embedding_forward.1} parent=1 // pred_region
      _
    $region81: #{custom_image_embedding_forward.1} parent=1 // pred_fallthru
      _
    %v67 = vld [vmem:[%s3] sm:$0xff]
    %v68 = vld [vmem:[%s3 + $0x8] sm:$0xff]
    %v69 = vld [vmem:[%s3 + $0x10] sm:$0xff]
    %v70 = vld [vmem:[%s3 + $0x18] sm:$0xff]
    %v71 = vld [vmem:[%s4] sm:$0xf]
    %v72 = vld [vmem:[%s0] sm:$0xff]
    %v73 = vld [vmem:[%s0 + $0x8] sm:$0xff]
    %v74 = vld [vmem:[%s1] sm:$0xf]
    %v75 = vld [vmem:[%s1 + $0x4] sm:$0xf]
    %v76 = vld [vmem:[%s1 + $0x8] sm:$0xf]
    %v77 = vld [vmem:[%s1 + $0xc] sm:$0xf]
    %v78 = vld [vmem:[%s1 + $0x10] sm:$0xf]
    %v79 = vld [vmem:[%s1 + $0x14] sm:$0xf]
    %v80 = vld [vmem:[%s1 + $0x18] sm:$0xf]
    %v81 = vld [vmem:[%s1 + $0x1c] sm:$0xf]
    %v82 = vld [vmem:[%s1 + $0x20] sm:$0xf]
    %v83 = vld [vmem:[%s1 + $0x24] sm:$0xf]
    %v84 = vld [vmem:[%s1 + $0x28] sm:$0xf]
    %v85 = vld [vmem:[%s1 + $0x2c] sm:$0xf]
    %v86 = vld [vmem:[%s1 + $0x30] sm:$0xf]
    %v87 = vld [vmem:[%s1 + $0x34] sm:$0xf]
    %v88 = vld [vmem:[%s1 + $0x38] sm:$0xf]
    %v89 = vld [vmem:[%s1 + $0x3c] sm:$0xf]
    %v90 = vld [vmem:[%s1 + $0x40] sm:$0xf]
    %v91 = vld [vmem:[%s1 + $0x44] sm:$0xf]
    %v92 = vld [vmem:[%s1 + $0x48] sm:$0xf]
    %v93 = vld [vmem:[%s1 + $0x4c] sm:$0xf]
    %v94 = vld [vmem:[%s1 + $0x50] sm:$0xf]
    %v95 = vld [vmem:[%s1 + $0x54] sm:$0xf]
    %v96 = vld [vmem:[%s1 + $0x58] sm:$0xf]
    %v97 = vld [vmem:[%s1 + $0x5c] sm:$0xf]
    %v98 = vpack.c.bf16 %v72, %v72
    %v99 = vpack.c.bf16 %v73, %v73
    %v100 = vld [vmem:[%s2] sm:$0xff]
    %v125 = vunpack.c.l.b16 %v74
    %v126 = vunpack.c.l.b16 %v75
    %v127 = vunpack.c.l.b16 %v76
    %v128 = vunpack.c.l.b16 %v77
    %v129 = vunpack.c.l.b16 %v78
    %v130 = vunpack.c.l.b16 %v79
    %v131 = vunpack.c.l.b16 %v80
    %v132 = vunpack.c.l.b16 %v81
    %v133 = vunpack.c.l.b16 %v82
    %v134 = vunpack.c.l.b16 %v83
    %v135 = vunpack.c.l.b16 %v84
    %v136 = vunpack.c.l.b16 %v85
    %v137 = vunpack.c.l.b16 %v86
    %v138 = vunpack.c.l.b16 %v87
    %v139 = vunpack.c.l.b16 %v88
    %v140 = vunpack.c.l.b16 %v89
    %v141 = vunpack.c.l.b16 %v90
    %v142 = vunpack.c.l.b16 %v91
    %v143 = vunpack.c.l.b16 %v92
    %v144 = vunpack.c.l.b16 %v93
    %v145 = vunpack.c.l.b16 %v94
    %v146 = vunpack.c.l.b16 %v95
    %v147 = vunpack.c.l.b16 %v96
    %v148 = vunpack.c.l.b16 %v97
    %v149 = vpack.c.b16 %v126, %v125
    %v150 = vpack.c.b16 %v128, %v127
    %v151 = vpack.c.b16 %v130, %v129
    %v152 = vpack.c.b16 %v132, %v131
    %v153 = vpack.c.b16 %v134, %v133
    %v154 = vpack.c.b16 %v136, %v135
    %v155 = vpack.c.b16 %v138, %v137
    %v156 = vpack.c.b16 %v140, %v139
    %v157 = vpack.c.b16 %v142, %v141
    %v158 = vpack.c.b16 %v144, %v143
    %v159 = vpack.c.b16 %v146, %v145
    %v160 = vpack.c.b16 %v148, %v147
    %vm173 = vcmask 523264
    %v175 = vsel %vm173, %v99, 0
    %177 = vmatpush.bf16.msra.mxu0 %v156
    %178 = vmatpush.bf16.msra.mxu0 %v155
    %179 = vmatpush.bf16.msra.mxu0 %v154
    %180 = vmatpush.bf16.msra.mxu0 %v153
    %181 = vmatpush.bf16.msra.mxu0 %v152
    %182 = vmatpush.bf16.msra.mxu0 %v151
    %183 = vmatpush.bf16.msra.mxu0 %v150
    %184 = vmatpush.bf16.msra.mxu0 %v149
    %185 = vmatmul.bf16.gmra.mxu0 %v98
    %v186 = vpop.f32.mrf.mxu0
    %v187 = vadd.f32 %v100, %v186
    %v188 = vpop.f32.mrf.mxu0
    %189 = vdwg.mxu0
    %190 = vmatpush.bf16.msra.mxu0 0
    %191 = vmatpush.bf16.msra.mxu0 0
    %192 = vmatpush.bf16.msra.mxu0 0
    %193 = vmatpush.bf16.msra.mxu0 0
    %194 = vmatpush.bf16.msra.mxu0 %v160
    %195 = vmatpush.bf16.msra.mxu0 %v159
    %196 = vmatpush.bf16.msra.mxu0 %v158
    %197 = vmatpush.bf16.msra.mxu0 %v157
    %198 = vmatmul.bf16.gmra.mxu0 %v175
    %v199 = vpop.f32.mrf.mxu0
    %v200 = vadd.f32 %v187, %v199
    %v201 = vpop.f32.mrf.mxu0
    %202 = vdwg.mxu0
    %v203 = vld [vmem:[%s6] sm:$0xf]
    %v204 = vld [vmem:[%s6 + $0x4] sm:$0xf]
    %v205 = vld [vmem:[%s6 + $0x8] sm:$0xf]
    %v206 = vld [vmem:[%s6 + $0xc] sm:$0xf]
    %v207 = vpack.c.bf16 %v200, %v200
    %v208 = vld [vmem:[%s7] sm:$0x1]
    %v210 = vperm.slane %v208, 0
    %v216 = vunpack.c.l.b16 %v203
    %v217 = vunpack.c.l.b16 %v204
    %v218 = vunpack.c.l.b16 %v205
    %v219 = vunpack.c.l.b16 %v206
    %v220 = vpack.c.b16 %v217, %v216
    %v221 = vpack.c.b16 %v219, %v218
    %vm224 = vcmask 261120
    %v226 = vsel %vm224, %v207, 0
    %228 = vmatpush.bf16.msra.mxu0 0
    %229 = vmatpush.bf16.msra.mxu0 0
    %230 = vmatpush.bf16.msra.mxu0 0
    %231 = vmatpush.bf16.msra.mxu0 0
    %232 = vmatpush.bf16.msra.mxu0 0
    %233 = vmatpush.bf16.msra.mxu0 0
    %234 = vmatpush.bf16.msra.mxu0 %v221
    %235 = vmatpush.bf16.msra.mxu0 %v220
    %236 = vmatmul.bf16.gmra.mxu0 %v226
    %v237 = vpop.f32.mrf.mxu0
    %v238 = vadd.f32 %v210, %v237
    %v239 = vpop.f32.mrf.mxu0
    %240 = vdwg.mxu0
    %242 = vrot.lane.b32.xlu0 %v238, 96
    %v243 = vpop.permute.xlu0 %242
    %v245 = vrot.slane %v243, 4
    %246 = vrot.lane.b32.xlu0 %v238, 64
    %v247 = vpop.permute.xlu0 %246
    %v249 = vrot.slane %v247, 4
    %v250 = vmul.f32 %v238, %v243
    %v252 = vsel %vm224, %v250, 0
    %254 = vmatpush.msra.mxu0 0.0
    %255 = vmatpush.msra.mxu0 0.0
    %256 = vmatpush.msra.mxu0 0.0
    %257 = vmatpush.msra.mxu0 0.0
    %258 = vmatpush.msra.mxu0 0.0
    %259 = vmatpush.msra.mxu0 0.0
    %260 = vmatpush.msra.mxu0 0.0
    %261 = vmatpush.msra.mxu0 0.0
    %262 = vmatpush.msra.mxu0 0.0
    %263 = vmatpush.msra.mxu0 0.0
    %264 = vmatpush.msra.mxu0 0.0
    %265 = vmatpush.msra.mxu0 0.0
    %266 = vmatpush.msra.mxu0 %v70
    %267 = vmatpush.msra.mxu0 %v69
    %268 = vmatpush.msra.mxu0 %v68
    %269 = vmatpush.msra.mxu0 %v67
    %270 = vmatmul.f32.gmra.mxu0 %v252
    %v271 = vpop.f32.mrf.mxu0
    %v272 = vadd.f32 0.0, %v271
    %273 = vdwg.mxu0
    %v274 = vmul.f32 %v238, %v245
    %v276 = vsel %vm224, %v274, 0
    %278 = vmatpush.msra.mxu0 0.0
    %279 = vmatpush.msra.mxu0 0.0
    %280 = vmatpush.msra.mxu0 0.0
    %281 = vmatpush.msra.mxu0 0.0
    %282 = vmatpush.msra.mxu0 0.0
    %283 = vmatpush.msra.mxu0 0.0
    %284 = vmatpush.msra.mxu0 0.0
    %285 = vmatpush.msra.mxu0 0.0
    %286 = vmatpush.msra.mxu0 0.0
    %287 = vmatpush.msra.mxu0 0.0
    %288 = vmatpush.msra.mxu0 0.0
    %289 = vmatpush.msra.mxu0 0.0
    %290 = vmatpush.msra.mxu0 %v70
    %291 = vmatpush.msra.mxu0 %v69
    %292 = vmatpush.msra.mxu0 %v68
    %293 = vmatpush.msra.mxu0 %v67
    %294 = vmatmul.f32.gmra.mxu0 %v276
    %v295 = vpop.f32.mrf.mxu0
    %v296 = vadd.f32 0.0, %v295
    %297 = vdwg.mxu0
    %v298 = vmax.f32 %v272, %v296
    %v299 = vsub.f32 %v272, %v298
    %v300 = vmul.f32 %v299, 1.442695
    %v301 = vpow.pop %v300
    %v302 = vsub.f32 %v296, %v298
    %v303 = vmul.f32 %v302, 1.442695
    %v304 = vpow.pop %v303
    %v305 = vadd.f32 %v301, %v304
    %v306 = vrcp.pop %v305
    %v307 = vmul.f32 %v301, %v306
    %vm308 = vcmask 31744
    %v310 = vsel %vm308, %v307, 0
    %vm312 = vcmask 1043456
    %v314 = vsel %vm312, %v71, 0
    %316 = vmatpush.msra.mxu0 0.0
    %317 = vmatpush.msra.mxu0 0.0
    %318 = vmatpush.msra.mxu0 0.0
    %319 = vmatpush.msra.mxu0 0.0
    %320 = vmatpush.msra.mxu0 0.0
    %321 = vmatpush.msra.mxu0 0.0
    %322 = vmatpush.msra.mxu0 0.0
    %323 = vmatpush.msra.mxu0 0.0
    %324 = vmatpush.msra.mxu0 0.0
    %325 = vmatpush.msra.mxu0 0.0
    %326 = vmatpush.msra.mxu0 0.0
    %327 = vmatpush.msra.mxu0 0.0
    %328 = vmatpush.msra.mxu0 0.0
    %329 = vmatpush.msra.mxu0 0.0
    %330 = vmatpush.msra.mxu0 0.0
    %331 = vmatpush.msra.mxu0 %v314
    %332 = vmatmul.f32.gmra.mxu0 %v310
    %v333 = vpop.f32.mrf.mxu0
    %v334 = vadd.f32 0.0, %v333
    %335 = vdwg.mxu0
    %v336 = vmul.f32 %v334, %v247
    %v337 = vmul.f32 %v304, %v306
    %v339 = vsel %vm308, %v337, 0
    %341 = vmatpush.msra.mxu0 0.0
    %342 = vmatpush.msra.mxu0 0.0
    %343 = vmatpush.msra.mxu0 0.0
    %344 = vmatpush.msra.mxu0 0.0
    %345 = vmatpush.msra.mxu0 0.0
    %346 = vmatpush.msra.mxu0 0.0
    %347 = vmatpush.msra.mxu0 0.0
    %348 = vmatpush.msra.mxu0 0.0
    %349 = vmatpush.msra.mxu0 0.0
    %350 = vmatpush.msra.mxu0 0.0
    %351 = vmatpush.msra.mxu0 0.0
    %352 = vmatpush.msra.mxu0 0.0
    %353 = vmatpush.msra.mxu0 0.0
    %354 = vmatpush.msra.mxu0 0.0
    %355 = vmatpush.msra.mxu0 0.0
    %356 = vmatpush.msra.mxu0 %v314
    %357 = vmatmul.f32.gmra.mxu0 %v339
    %v358 = vpop.f32.mrf.mxu0
    %v359 = vadd.f32 0.0, %v358
    %360 = vdwg.mxu0
    %v361 = vmul.f32 %v359, %v249
    %v362 = vadd.f32 %v336, %v361
    %v363 = vld [vmem:[%s8] sm:$0xf]
    %v364 = vld [vmem:[%s8 + $0x4] sm:$0xf]
    %v365 = vld [vmem:[%s8 + $0x8] sm:$0xf]
    %v366 = vld [vmem:[%s8 + $0xc] sm:$0xf]
    %v367 = vpack.c.bf16 %v362, %v362
    %v368 = vld [vmem:[%s9] sm:$0x1]
    %v370 = vperm.slane %v368, 0
    %v376 = vunpack.c.l.b16 %v363
    %v377 = vunpack.c.l.b16 %v364
    %v378 = vunpack.c.l.b16 %v365
    %v379 = vunpack.c.l.b16 %v366
    %v380 = vpack.c.b16 %v377, %v376
    %v381 = vpack.c.b16 %v379, %v378
    %v385 = vsel %vm224, %v367, 0
    %387 = vmatpush.bf16.msra.mxu0 0
    %388 = vmatpush.bf16.msra.mxu0 0
    %389 = vmatpush.bf16.msra.mxu0 0
    %390 = vmatpush.bf16.msra.mxu0 0
    %391 = vmatpush.bf16.msra.mxu0 0
    %392 = vmatpush.bf16.msra.mxu0 0
    %393 = vmatpush.bf16.msra.mxu0 %v381
    %394 = vmatpush.bf16.msra.mxu0 %v380
    %395 = vmatmul.bf16.gmra.mxu0 %v385
    %v396 = vpop.f32.mrf.mxu0
    %v397 = vadd.f32 %v370, %v396
    %v398 = vpop.f32.mrf.mxu0
    %399 = vdwg.mxu0
    %v400 = vadd.f32 %v200, %v397
    %v401 = vld [vmem:[%s10] sm:$0x1]
    %v402 = vld [vmem:[%s11] sm:$0x1]
    %v403 = vsel %vm224, %v400, 0.0
    %404 = vadd.xlane.f32.xlu0 %v403
    %v405 = vpop.xlane.xlu0 %404
    %v406 = vrcp.pop 32.0
    %v407 = vmul.f32 32.0, %v406
    %v408 = vsub.f32 1.0, %v407
    %v409 = vmul.f32 %v406, %v408
    %v410 = vadd.f32 %v406, %v409
    %vm411 = vweird.f32 %v406
    %v412 = vsel %vm411, %v406, %v410
    %v413 = vmul.f32 %v405, %v412
    %v414 = vsub.f32 %v400, %v413
    %v415 = vmul.f32 %v414, %v414
    %v416 = vsel %vm224, %v415, 0.0
    %417 = vadd.xlane.f32.xlu0 %v416
    %v418 = vpop.xlane.xlu0 %417
    %v419 = vmul.f32 %v418, %v412
    %v420 = vadd.f32 %v419, 1e-05
    %v421 = vrsqrt.pop %v420
    %v422 = vmul.f32 %v421, %v420
    %v423 = vmul.f32 %v422, %v421
    %v424 = vmul.f32 0.5, %v423
    %v425 = vsub.f32 1.5, %v424
    %v426 = vmul.f32 %v421, %v425
    %vm427 = vweird.f32 %v420
    %vm428 = vweird.f32 %v421
    %vm429 = vmor %vm427, %vm428
    %v430 = vsel %vm429, %v421, %v426
    %v431 = vmul.f32 %v414, %v430
    %v433 = vperm.slane %v401, 0
    %v435 = vmul.f32 %v431, %v433
    %v437 = vperm.slane %v402, 0
    %v439 = vadd.f32 %v435, %v437
    %v440 = vld [vmem:[%s12] sm:$0xf]
    %v441 = vld [vmem:[%s12 + $0x4] sm:$0xf]
    %v442 = vld [vmem:[%s12 + $0x8] sm:$0xf]
    %v443 = vld [vmem:[%s12 + $0xc] sm:$0xf]
    %v444 = vpack.c.bf16 %v439, %v439
    %v445 = vld [vmem:[%s13] sm:$0x1]
    %v447 = vperm.slane %v445, 0
    %v453 = vunpack.c.l.b16 %v440
    %v454 = vunpack.c.l.b16 %v441
    %v455 = vunpack.c.l.b16 %v442
    %v456 = vunpack.c.l.b16 %v443
    %v457 = vpack.c.b16 %v454, %v453
    %v458 = vpack.c.b16 %v456, %v455
    %v462 = vsel %vm224, %v444, 0
    %464 = vmatpush.bf16.msra.mxu0 0
    %465 = vmatpush.bf16.msra.mxu0 0
    %466 = vmatpush.bf16.msra.mxu0 0
    %467 = vmatpush.bf16.msra.mxu0 0
    %468 = vmatpush.bf16.msra.mxu0 0
    %469 = vmatpush.bf16.msra.mxu0 0
    %470 = vmatpush.bf16.msra.mxu0 %v458
    %471 = vmatpush.bf16.msra.mxu0 %v457
    %472 = vmatmul.bf16.gmra.mxu0 %v462
    %v473 = vpop.f32.mrf.mxu0
    %v474 = vadd.f32 %v447, %v473
    %v475 = vpop.f32.mrf.mxu0
    %476 = vdwg.mxu0
    %v477 = vmax.f32 %v474, 0.0
    %v478 = vld [vmem:[%s14] sm:$0xf]
    %v479 = vld [vmem:[%s14 + $0x4] sm:$0xf]
    %v480 = vld [vmem:[%s14 + $0x8] sm:$0xf]
    %v481 = vld [vmem:[%s14 + $0xc] sm:$0xf]
    %v482 = vld [vmem:[%s14 + $0x10] sm:$0xf]
    %v483 = vld [vmem:[%s14 + $0x14] sm:$0xf]
    %v484 = vld [vmem:[%s14 + $0x18] sm:$0xf]
    %v485 = vld [vmem:[%s14 + $0x1c] sm:$0xf]
    %v486 = vld [vmem:[%s14 + $0x20] sm:$0xf]
    %v487 = vld [vmem:[%s14 + $0x24] sm:$0xf]
    %v488 = vld [vmem:[%s14 + $0x28] sm:$0xf]
    %v489 = vld [vmem:[%s14 + $0x2c] sm:$0xf]
    %v490 = vld [vmem:[%s14 + $0x30] sm:$0xf]
    %v491 = vld [vmem:[%s14 + $0x34] sm:$0xf]
    %v492 = vld [vmem:[%s14 + $0x38] sm:$0xf]
    %v493 = vld [vmem:[%s14 + $0x3c] sm:$0xf]
    %v494 = vpack.c.bf16 %v477, %v477
    %v495 = vld [vmem:[%s15] sm:$0x1]
    %v497 = vperm.slane %v495, 0
    %v515 = vunpack.c.l.b16 %v478
    %v516 = vunpack.c.l.b16 %v479
    %v517 = vunpack.c.l.b16 %v480
    %v518 = vunpack.c.l.b16 %v481
    %v519 = vunpack.c.l.b16 %v482
    %v520 = vunpack.c.l.b16 %v483
    %v521 = vunpack.c.l.b16 %v484
    %v522 = vunpack.c.l.b16 %v485
    %v523 = vunpack.c.l.b16 %v486
    %v524 = vunpack.c.l.b16 %v487
    %v525 = vunpack.c.l.b16 %v488
    %v526 = vunpack.c.l.b16 %v489
    %v527 = vunpack.c.l.b16 %v490
    %v528 = vunpack.c.l.b16 %v491
    %v529 = vunpack.c.l.b16 %v492
    %v530 = vunpack.c.l.b16 %v493
    %v531 = vpack.c.b16 %v516, %v515
    %v532 = vpack.c.b16 %v518, %v517
    %v533 = vpack.c.b16 %v520, %v519
    %v534 = vpack.c.b16 %v522, %v521
    %v535 = vpack.c.b16 %v524, %v523
    %v536 = vpack.c.b16 %v526, %v525
    %v537 = vpack.c.b16 %v528, %v527
    %v538 = vpack.c.b16 %v530, %v529
    %547 = vmatpush.bf16.msra.mxu0 %v538
    %548 = vmatpush.bf16.msra.mxu0 %v537
    %549 = vmatpush.bf16.msra.mxu0 %v536
    %550 = vmatpush.bf16.msra.mxu0 %v535
    %551 = vmatpush.bf16.msra.mxu0 %v534
    %552 = vmatpush.bf16.msra.mxu0 %v533
    %553 = vmatpush.bf16.msra.mxu0 %v532
    %554 = vmatpush.bf16.msra.mxu0 %v531
    %555 = vmatmul.bf16.gmra.mxu0 %v494
    %v556 = vpop.f32.mrf.mxu0
    %v557 = vadd.f32 %v497, %v556
    %v558 = vpop.f32.mrf.mxu0
    %559 = vdwg.mxu0
    %v560 = vadd.f32 %v439, %v557
    %v561 = vld [vmem:[%s16] sm:$0x1]
    %v562 = vld [vmem:[%s17] sm:$0x1]
    %v563 = vsel %vm224, %v560, 0.0
    %564 = vadd.xlane.f32.xlu0 %v563
    %v565 = vpop.xlane.xlu0 %564
    %v566 = vmul.f32 %v565, %v412
    %v567 = vsub.f32 %v560, %v566
    %v568 = vmul.f32 %v567, %v567
    %v569 = vsel %vm224, %v568, 0.0
    %570 = vadd.xlane.f32.xlu0 %v569
    %v571 = vpop.xlane.xlu0 %570
    %v572 = vmul.f32 %v571, %v412
    %v573 = vadd.f32 %v572, 1e-05
    %v574 = vrsqrt.pop %v573
    %v575 = vmul.f32 %v574, %v573
    %v576 = vmul.f32 %v575, %v574
    %v577 = vmul.f32 0.5, %v576
    %v578 = vsub.f32 1.5, %v577
    %v579 = vmul.f32 %v574, %v578
    %vm580 = vweird.f32 %v573
    %vm581 = vweird.f32 %v574
    %vm582 = vmor %vm580, %vm581
    %v583 = vsel %vm582, %v574, %v579
    %v584 = vmul.f32 %v567, %v583
    %v586 = vperm.slane %v561, 0
    %v588 = vmul.f32 %v584, %v586
    %v590 = vperm.slane %v562, 0
    %v592 = vadd.f32 %v588, %v590
    %s593 = scalar_lea.vmem %s6, 16
    %v594 = vld [vmem:[%s593] sm:$0xf]
    %v595 = vld [vmem:[%s593 + $0x4] sm:$0xf]
    %v596 = vld [vmem:[%s593 + $0x8] sm:$0xf]
    %v597 = vld [vmem:[%s593 + $0xc] sm:$0xf]
    %v598 = vpack.c.bf16 %v592, %v592
    %s599 = scalar_lea.vmem %s7, 1
    %v600 = vld [vmem:[%s599] sm:$0x1]
    %v602 = vperm.slane %v600, 0
    %v608 = vunpack.c.l.b16 %v594
    %v609 = vunpack.c.l.b16 %v595
    %v610 = vunpack.c.l.b16 %v596
    %v611 = vunpack.c.l.b16 %v597
    %v612 = vpack.c.b16 %v609, %v608
    %v613 = vpack.c.b16 %v611, %v610
    %v617 = vsel %vm224, %v598, 0
    %619 = vmatpush.bf16.msra.mxu0 0
    %620 = vmatpush.bf16.msra.mxu0 0
    %621 = vmatpush.bf16.msra.mxu0 0
    %622 = vmatpush.bf16.msra.mxu0 0
    %623 = vmatpush.bf16.msra.mxu0 0
    %624 = vmatpush.bf16.msra.mxu0 0
    %625 = vmatpush.bf16.msra.mxu0 %v613
    %626 = vmatpush.bf16.msra.mxu0 %v612
    %627 = vmatmul.bf16.gmra.mxu0 %v617
    %v628 = vpop.f32.mrf.mxu0
    %v629 = vadd.f32 %v602, %v628
    %v630 = vpop.f32.mrf.mxu0
    %631 = vdwg.mxu0
    %633 = vrot.lane.b32.xlu0 %v629, 96
    %v634 = vpop.permute.xlu0 %633
    %v636 = vrot.slane %v634, 4
    %637 = vrot.lane.b32.xlu0 %v629, 64
    %v638 = vpop.permute.xlu0 %637
    %v640 = vrot.slane %v638, 4
    %v641 = vmul.f32 %v629, %v634
    %v643 = vsel %vm224, %v641, 0
    %645 = vmatpush.msra.mxu0 0.0
    %646 = vmatpush.msra.mxu0 0.0
    %647 = vmatpush.msra.mxu0 0.0
    %648 = vmatpush.msra.mxu0 0.0
    %649 = vmatpush.msra.mxu0 0.0
    %650 = vmatpush.msra.mxu0 0.0
    %651 = vmatpush.msra.mxu0 0.0
    %652 = vmatpush.msra.mxu0 0.0
    %653 = vmatpush.msra.mxu0 0.0
    %654 = vmatpush.msra.mxu0 0.0
    %655 = vmatpush.msra.mxu0 0.0
    %656 = vmatpush.msra.mxu0 0.0
    %657 = vmatpush.msra.mxu0 %v70
    %658 = vmatpush.msra.mxu0 %v69
    %659 = vmatpush.msra.mxu0 %v68
    %660 = vmatpush.msra.mxu0 %v67
    %661 = vmatmul.f32.gmra.mxu0 %v643
    %v662 = vpop.f32.mrf.mxu0
    %v663 = vadd.f32 0.0, %v662
    %664 = vdwg.mxu0
    %v665 = vmul.f32 %v629, %v636
    %v667 = vsel %vm224, %v665, 0
    %669 = vmatpush.msra.mxu0 0.0
    %670 = vmatpush.msra.mxu0 0.0
    %671 = vmatpush.msra.mxu0 0.0
    %672 = vmatpush.msra.mxu0 0.0
    %673 = vmatpush.msra.mxu0 0.0
    %674 = vmatpush.msra.mxu0 0.0
    %675 = vmatpush.msra.mxu0 0.0
    %676 = vmatpush.msra.mxu0 0.0
    %677 = vmatpush.msra.mxu0 0.0
    %678 = vmatpush.msra.mxu0 0.0
    %679 = vmatpush.msra.mxu0 0.0
    %680 = vmatpush.msra.mxu0 0.0
    %681 = vmatpush.msra.mxu0 %v70
    %682 = vmatpush.msra.mxu0 %v69
    %683 = vmatpush.msra.mxu0 %v68
    %684 = vmatpush.msra.mxu0 %v67
    %685 = vmatmul.f32.gmra.mxu0 %v667
    %v686 = vpop.f32.mrf.mxu0
    %v687 = vadd.f32 0.0, %v686
    %688 = vdwg.mxu0
    %v689 = vmax.f32 %v663, %v687
    %v690 = vsub.f32 %v663, %v689
    %v691 = vmul.f32 %v690, 1.442695
    %v692 = vpow.pop %v691
    %v693 = vsub.f32 %v687, %v689
    %v694 = vmul.f32 %v693, 1.442695
    %v695 = vpow.pop %v694
    %v696 = vadd.f32 %v692, %v695
    %v697 = vrcp.pop %v696
    %v698 = vmul.f32 %v692, %v697
    %v700 = vsel %vm308, %v698, 0
    %702 = vmatpush.msra.mxu0 0.0
    %703 = vmatpush.msra.mxu0 0.0
    %704 = vmatpush.msra.mxu0 0.0
    %705 = vmatpush.msra.mxu0 0.0
    %706 = vmatpush.msra.mxu0 0.0
    %707 = vmatpush.msra.mxu0 0.0
    %708 = vmatpush.msra.mxu0 0.0
    %709 = vmatpush.msra.mxu0 0.0
    %710 = vmatpush.msra.mxu0 0.0
    %711 = vmatpush.msra.mxu0 0.0
    %712 = vmatpush.msra.mxu0 0.0
    %713 = vmatpush.msra.mxu0 0.0
    %714 = vmatpush.msra.mxu0 0.0
    %715 = vmatpush.msra.mxu0 0.0
    %716 = vmatpush.msra.mxu0 0.0
    %717 = vmatpush.msra.mxu0 %v314
    %718 = vmatmul.f32.gmra.mxu0 %v700
    %v719 = vpop.f32.mrf.mxu0
    %v720 = vadd.f32 0.0, %v719
    %721 = vdwg.mxu0
    %v722 = vmul.f32 %v720, %v638
    %v723 = vmul.f32 %v695, %v697
    %v725 = vsel %vm308, %v723, 0
    %727 = vmatpush.msra.mxu0 0.0
    %728 = vmatpush.msra.mxu0 0.0
    %729 = vmatpush.msra.mxu0 0.0
    %730 = vmatpush.msra.mxu0 0.0
    %731 = vmatpush.msra.mxu0 0.0
    %732 = vmatpush.msra.mxu0 0.0
    %733 = vmatpush.msra.mxu0 0.0
    %734 = vmatpush.msra.mxu0 0.0
    %735 = vmatpush.msra.mxu0 0.0
    %736 = vmatpush.msra.mxu0 0.0
    %737 = vmatpush.msra.mxu0 0.0
    %738 = vmatpush.msra.mxu0 0.0
    %739 = vmatpush.msra.mxu0 0.0
    %740 = vmatpush.msra.mxu0 0.0
    %741 = vmatpush.msra.mxu0 0.0
    %742 = vmatpush.msra.mxu0 %v314
    %743 = vmatmul.f32.gmra.mxu0 %v725
    %v744 = vpop.f32.mrf.mxu0
    %v745 = vadd.f32 0.0, %v744
    %746 = vdwg.mxu0
    %v747 = vmul.f32 %v745, %v640
    %v748 = vadd.f32 %v722, %v747
    %s749 = scalar_lea.vmem %s8, 16
    %v750 = vld [vmem:[%s749] sm:$0xf]
    %v751 = vld [vmem:[%s749 + $0x4] sm:$0xf]
    %v752 = vld [vmem:[%s749 + $0x8] sm:$0xf]
    %v753 = vld [vmem:[%s749 + $0xc] sm:$0xf]
    %v754 = vpack.c.bf16 %v748, %v748
    %s755 = scalar_lea.vmem %s9, 1
    %v756 = vld [vmem:[%s755] sm:$0x1]
    %v758 = vperm.slane %v756, 0
    %v764 = vunpack.c.l.b16 %v750
    %v765 = vunpack.c.l.b16 %v751
    %v766 = vunpack.c.l.b16 %v752
    %v767 = vunpack.c.l.b16 %v753
    %v768 = vpack.c.b16 %v765, %v764
    %v769 = vpack.c.b16 %v767, %v766
    %v773 = vsel %vm224, %v754, 0
    %775 = vmatpush.bf16.msra.mxu0 0
    %776 = vmatpush.bf16.msra.mxu0 0
    %777 = vmatpush.bf16.msra.mxu0 0
    %778 = vmatpush.bf16.msra.mxu0 0
    %779 = vmatpush.bf16.msra.mxu0 0
    %780 = vmatpush.bf16.msra.mxu0 0
    %781 = vmatpush.bf16.msra.mxu0 %v769
    %782 = vmatpush.bf16.msra.mxu0 %v768
    %783 = vmatmul.bf16.gmra.mxu0 %v773
    %v784 = vpop.f32.mrf.mxu0
    %v785 = vadd.f32 %v758, %v784
    %v786 = vpop.f32.mrf.mxu0
    %787 = vdwg.mxu0
    %v788 = vadd.f32 %v592, %v785
    %s789 = scalar_lea.vmem %s10, 1
    %v790 = vld [vmem:[%s789] sm:$0x1]
    %s791 = scalar_lea.vmem %s11, 1
    %v792 = vld [vmem:[%s791] sm:$0x1]
    %v793 = vsel %vm224, %v788, 0.0
    %794 = vadd.xlane.f32.xlu0 %v793
    %v795 = vpop.xlane.xlu0 %794
    %v796 = vmul.f32 %v795, %v412
    %v797 = vsub.f32 %v788, %v796
    %v798 = vmul.f32 %v797, %v797
    %v799 = vsel %vm224, %v798, 0.0
    %800 = vadd.xlane.f32.xlu0 %v799
    %v801 = vpop.xlane.xlu0 %800
    %v802 = vmul.f32 %v801, %v412
    %v803 = vadd.f32 %v802, 1e-05
    %v804 = vrsqrt.pop %v803
    %v805 = vmul.f32 %v804, %v803
    %v806 = vmul.f32 %v805, %v804
    %v807 = vmul.f32 0.5, %v806
    %v808 = vsub.f32 1.5, %v807
    %v809 = vmul.f32 %v804, %v808
    %vm810 = vweird.f32 %v803
    %vm811 = vweird.f32 %v804
    %vm812 = vmor %vm810, %vm811
    %v813 = vsel %vm812, %v804, %v809
    %v814 = vmul.f32 %v797, %v813
    %v816 = vperm.slane %v790, 0
    %v818 = vmul.f32 %v814, %v816
    %v820 = vperm.slane %v792, 0
    %v822 = vadd.f32 %v818, %v820
    %s823 = scalar_lea.vmem %s12, 16
    %v824 = vld [vmem:[%s823] sm:$0xf]
    %v825 = vld [vmem:[%s823 + $0x4] sm:$0xf]
    %v826 = vld [vmem:[%s823 + $0x8] sm:$0xf]
    %v827 = vld [vmem:[%s823 + $0xc] sm:$0xf]
    %v828 = vpack.c.bf16 %v822, %v822
    %s829 = scalar_lea.vmem %s13, 1
    %v830 = vld [vmem:[%s829] sm:$0x1]
    %v832 = vperm.slane %v830, 0
    %v838 = vunpack.c.l.b16 %v824
    %v839 = vunpack.c.l.b16 %v825
    %v840 = vunpack.c.l.b16 %v826
    %v841 = vunpack.c.l.b16 %v827
    %v842 = vpack.c.b16 %v839, %v838
    %v843 = vpack.c.b16 %v841, %v840
    %v847 = vsel %vm224, %v828, 0
    %849 = vmatpush.bf16.msra.mxu0 0
    %850 = vmatpush.bf16.msra.mxu0 0
    %851 = vmatpush.bf16.msra.mxu0 0
    %852 = vmatpush.bf16.msra.mxu0 0
    %853 = vmatpush.bf16.msra.mxu0 0
    %854 = vmatpush.bf16.msra.mxu0 0
    %855 = vmatpush.bf16.msra.mxu0 %v843
    %856 = vmatpush.bf16.msra.mxu0 %v842
    %857 = vmatmul.bf16.gmra.mxu0 %v847
    %v858 = vpop.f32.mrf.mxu0
    %v859 = vadd.f32 %v832, %v858
    %v860 = vpop.f32.mrf.mxu0
    %861 = vdwg.mxu0
    %v862 = vmax.f32 %v859, 0.0
    %s863 = scalar_lea.vmem %s14, 64
    %v864 = vld [vmem:[%s863] sm:$0xf]
    %v865 = vld [vmem:[%s863 + $0x4] sm:$0xf]
    %v866 = vld [vmem:[%s863 + $0x8] sm:$0xf]
    %v867 = vld [vmem:[%s863 + $0xc] sm:$0xf]
    %v868 = vld [vmem:[%s863 + $0x10] sm:$0xf]
    %v869 = vld [vmem:[%s863 + $0x14] sm:$0xf]
    %v870 = vld [vmem:[%s863 + $0x18] sm:$0xf]
    %v871 = vld [vmem:[%s863 + $0x1c] sm:$0xf]
    %v872 = vld [vmem:[%s863 + $0x20] sm:$0xf]
    %v873 = vld [vmem:[%s863 + $0x24] sm:$0xf]
    %v874 = vld [vmem:[%s863 + $0x28] sm:$0xf]
    %v875 = vld [vmem:[%s863 + $0x2c] sm:$0xf]
    %v876 = vld [vmem:[%s863 + $0x30] sm:$0xf]
    %v877 = vld [vmem:[%s863 + $0x34] sm:$0xf]
    %v878 = vld [vmem:[%s863 + $0x38] sm:$0xf]
    %v879 = vld [vmem:[%s863 + $0x3c] sm:$0xf]
    %v880 = vpack.c.bf16 %v862, %v862
    %s881 = scalar_lea.vmem %s15, 1
    %v882 = vld [vmem:[%s881] sm:$0x1]
    %v884 = vperm.slane %v882, 0
    %v902 = vunpack.c.l.b16 %v864
    %v903 = vunpack.c.l.b16 %v865
    %v904 = vunpack.c.l.b16 %v866
    %v905 = vunpack.c.l.b16 %v867
    %v906 = vunpack.c.l.b16 %v868
    %v907 = vunpack.c.l.b16 %v869
    %v908 = vunpack.c.l.b16 %v870
    %v909 = vunpack.c.l.b16 %v871
    %v910 = vunpack.c.l.b16 %v872
    %v911 = vunpack.c.l.b16 %v873
    %v912 = vunpack.c.l.b16 %v874
    %v913 = vunpack.c.l.b16 %v875
    %v914 = vunpack.c.l.b16 %v876
    %v915 = vunpack.c.l.b16 %v877
    %v916 = vunpack.c.l.b16 %v878
    %v917 = vunpack.c.l.b16 %v879
    %v918 = vpack.c.b16 %v903, %v902
    %v919 = vpack.c.b16 %v905, %v904
    %v920 = vpack.c.b16 %v907, %v906
    %v921 = vpack.c.b16 %v909, %v908
    %v922 = vpack.c.b16 %v911, %v910
    %v923 = vpack.c.b16 %v913, %v912
    %v924 = vpack.c.b16 %v915, %v914
    %v925 = vpack.c.b16 %v917, %v916
    %934 = vmatpush.bf16.msra.mxu0 %v925
    %935 = vmatpush.bf16.msra.mxu0 %v924
    %936 = vmatpush.bf16.msra.mxu0 %v923
    %937 = vmatpush.bf16.msra.mxu0 %v922
    %938 = vmatpush.bf16.msra.mxu0 %v921
    %939 = vmatpush.bf16.msra.mxu0 %v920
    %940 = vmatpush.bf16.msra.mxu0 %v919
    %941 = vmatpush.bf16.msra.mxu0 %v918
    %942 = vmatmul.bf16.gmra.mxu0 %v880
    %v943 = vpop.f32.mrf.mxu0
    %v944 = vadd.f32 %v884, %v943
    %v945 = vpop.f32.mrf.mxu0
    %946 = vdwg.mxu0
    %v947 = vadd.f32 %v822, %v944
    %s948 = scalar_lea.vmem %s16, 1
    %v949 = vld [vmem:[%s948] sm:$0x1]
    %s950 = scalar_lea.vmem %s17, 1
    %v951 = vld [vmem:[%s950] sm:$0x1]
    %v952 = vsel %vm224, %v947, 0.0
    %953 = vadd.xlane.f32.xlu0 %v952
    %v954 = vpop.xlane.xlu0 %953
    %v955 = vmul.f32 %v954, %v412
    %v956 = vsub.f32 %v947, %v955
    %v957 = vmul.f32 %v956, %v956
    %v958 = vsel %vm224, %v957, 0.0
    %959 = vadd.xlane.f32.xlu0 %v958
    %v960 = vpop.xlane.xlu0 %959
    %v961 = vmul.f32 %v960, %v412
    %v962 = vadd.f32 %v961, 1e-05
    %v963 = vrsqrt.pop %v962
    %v964 = vmul.f32 %v963, %v962
    %v965 = vmul.f32 %v964, %v963
    %v966 = vmul.f32 0.5, %v965
    %v967 = vsub.f32 1.5, %v966
    %v968 = vmul.f32 %v963, %v967
    %vm969 = vweird.f32 %v962
    %vm970 = vweird.f32 %v963
    %vm971 = vmor %vm969, %vm970
    %v972 = vsel %vm971, %v963, %v968
    %v973 = vmul.f32 %v956, %v972
    %v975 = vperm.slane %v949, 0
    %v977 = vmul.f32 %v973, %v975
    %v979 = vperm.slane %v951, 0
    %v981 = vadd.f32 %v977, %v979
    %v982 = vld [vmem:[%s5] sm:$0x3]
    %vm983 = vcmask 64512
    %v985 = vsel %vm983, %v982, 0
    %987 = vmatpush.msra.mxu0 0.0
    %988 = vmatpush.msra.mxu0 0.0
    %989 = vmatpush.msra.mxu0 0.0
    %990 = vmatpush.msra.mxu0 0.0
    %991 = vmatpush.msra.mxu0 0.0
    %992 = vmatpush.msra.mxu0 0.0
    %993 = vmatpush.msra.mxu0 0.0
    %994 = vmatpush.msra.mxu0 0.0
    %995 = vmatpush.msra.mxu0 0.0
    %996 = vmatpush.msra.mxu0 0.0
    %997 = vmatpush.msra.mxu0 0.0
    %998 = vmatpush.msra.mxu0 0.0
    %999 = vmatpush.msra.mxu0 0.0
    %1000 = vmatpush.msra.mxu0 0.0
    %1001 = vmatpush.msra.mxu0 0.0
    %1002 = vmatpush.msra.mxu0 %v981
    %1003 = vmatmul.f32.gmra.mxu0 %v985
    %v1004 = vpop.f32.mrf.mxu0
    %v1005 = vadd.f32 0.0, %v1004
    %1006 = vdwg.mxu0
    %v1007 = vld [vmem:[%s18] sm:$0xf]
    %v1008 = vld [vmem:[%s18 + $0x4] sm:$0xf]
    %v1009 = vld [vmem:[%s18 + $0x8] sm:$0xf]
    %v1010 = vld [vmem:[%s18 + $0xc] sm:$0xf]
    %v1011 = vpack.c.bf16 %v1005, %v1005
    %v1012 = vld [vmem:[%s19] sm:$0x1]
    %v1014 = vperm.slane %v1012, 0
    %v1020 = vunpack.c.l.b16 %v1007
    %v1021 = vunpack.c.l.b16 %v1008
    %v1022 = vunpack.c.l.b16 %v1009
    %v1023 = vunpack.c.l.b16 %v1010
    %v1024 = vpack.c.b16 %v1021, %v1020
    %v1025 = vpack.c.b16 %v1023, %v1022
    %v1029 = vsel %vm224, %v1011, 0
    %1031 = vmatpush.bf16.msra.mxu0 0
    %1032 = vmatpush.bf16.msra.mxu0 0
    %1033 = vmatpush.bf16.msra.mxu0 0
    %1034 = vmatpush.bf16.msra.mxu0 0
    %1035 = vmatpush.bf16.msra.mxu0 0
    %1036 = vmatpush.bf16.msra.mxu0 0
    %1037 = vmatpush.bf16.msra.mxu0 %v1025
    %1038 = vmatpush.bf16.msra.mxu0 %v1024
    %1039 = vmatmul.bf16.gmra.mxu0 %v1029
    %v1040 = vpop.f32.mrf.mxu0
    %v1041 = vadd.f32 %v1014, %v1040
    %v1042 = vpop.f32.mrf.mxu0
    %1043 = vdwg.mxu0
    %v1044 = vxor.u32 %v1041, 2147483648
    %v1045 = vmul.f32 %v1044, 1.442695
    %v1046 = vpow.pop %v1045
    %v1047 = vadd.f32 %v1046, 1.0
    %v1048 = vrcp.pop %v1047
    %v1049 = vmul.f32 %v1047, %v1048
    %v1050 = vsub.f32 1.0, %v1049
    %v1051 = vmul.f32 %v1048, %v1050
    %v1052 = vadd.f32 %v1048, %v1051
    %vm1053 = vweird.f32 %v1047
    %vm1054 = vweird.f32 %v1048
    %vm1055 = vmor %vm1053, %vm1054
    %v1056 = vsel %vm1055, %v1048, %v1052
    %v1057 = vand.u32 2147483647, %v1047
    %vm1058 = vcmp.eq.f32.partialorder %v1057, 8.507059e+37
    %v1059 = vand.u32 %v1047, 2147483648
    %v1060 = vor.u32 1.1754944e-38, %v1059
    %v1061 = vsel %vm1058, %v1060, %v1056
    %v1062 = vmul.f32 1.0, %v1061
    %vm1063 = vcmask 254976
    %1064 = vst.msk [vmem:[#allocation2] sm:$0x3] %vm1063, %v1062
    // Predicated region
    $region82: #{custom_image_embedding_forward.1} parent=1 // pred_check
      _
    $region83: #{custom_image_embedding_forward.1} parent=1 // pred_check_branch
      %1066 = sbr.rel (0) target = $region85
    $region84: #{custom_image_embedding_forward.1} parent=1 // pred_region
      %1068 = vsyncadd [#allocation3], 0
      %s1070 = sshll.u32 [#allocation2], 4
      %s1071 = int_to_ptr.vmem [resolvable:$true] %s1070
      %s1072 = sshll.u32 %s20, 4
      %s1073 = int_to_ptr.hbm [resolvable:$true] %s1072
      %1075 = dma.vmem_to_hbm [thread:$0]  %s1071, 32, %s1073, [#allocation3]
    $region85: #{custom_image_embedding_forward.1} parent=1 // pred_fallthru
      _
    // Predicated region
    $region86: #{custom_image_embedding_forward.1} parent=1 // pred_check
      _
    $region87: #{custom_image_embedding_forward.1} parent=1 // pred_check_branch
      %1077 = sbr.rel (0) target = $region89
    $region88: #{custom_image_embedding_forward.1} parent=1 // pred_region
      %1079 = dma.done [#allocation3], 32
    $region89: #{custom_image_embedding_forward.1} parent=1 // pred_fallthru
      _
    %1080 = vsyncpa [#allocation3], 1

</llo_original>
